<compile_context>
chip_gen: v5e
topology: v5e:2x2
jax: 0.10.0
libtpu: 0.0.40
codegen_flags: <defaults>
</compile_context>

<pallas_src>
import functools

import jax
import jax.numpy as jnp
from jax.experimental import pallas as pl
from jax.experimental.pallas import tpu as pltpu


# ---------------------------------------------------------------------------
# Fused kernel: QKV proj -> per-head SDPA -> final linear -> +residual -> LayerNorm
# grid = (B,), everything for one batch element stays resident in VMEM.
# ---------------------------------------------------------------------------
def fused_mha_kernel(x_ref, wqkv_ref, bqkv_ref, wf_ref, bf_ref, g_ref, beta_ref,
                     out_ref, att_ref,
                     qh_scr, kh_scr, vh_scr, ctx_scr,
                     *, num_heads, scale, eps, mxu_dtype):
    x = x_ref[0]                                  # (S, D) float32
    S, D = x.shape
    H = num_heads
    d = D // H
    r = S // H                                    # projection rows per head

    # ---- 1. fused QKV projection: ONE (S,D)x(D,3D) MXU matmul (lane-dense 3D slab) ----
    qkv = jnp.dot(x.astype(mxu_dtype), wqkv_ref[...].astype(mxu_dtype),
                  preferred_element_type=jnp.float32) + bqkv_ref[...]
    qp = qkv[:, 0 * D:1 * D] * scale              # fold softmax scale into q
    kp = qkv[:, 1 * D:2 * D]
    vp = qkv[:, 2 * D:3 * D]

    # ---- 2. faithful torch .view(B*H, S, d) head split, stored row-permuted ----
    # torch head h row (a*H + u) == Qp[h*r + a, u*d:(u+1)*d]; we store it at row (u*r + a)
    # so only static slices / sub-tile stores are needed (no lane-regrouping reshape).
    for h in range(H):
        for u in range(H):
            blk_rows = slice(h * r, (h + 1) * r)
            blk_cols = slice(u * d, (u + 1) * d)
            dst_rows = slice(u * r, (u + 1) * r)
            qh_scr[h, dst_rows, :] = qp[blk_rows, blk_cols]
            kh_scr[h, dst_rows, :] = kp[blk_rows, blk_cols]
            vh_scr[h, dst_rows, :] = vp[blk_rows, blk_cols]

    qh = qh_scr[...].astype(mxu_dtype)            # (H, S, d)
    kh = kh_scr[...].astype(mxu_dtype)
    vh = vh_scr[...].astype(mxu_dtype)

    # ---- 3. scaled dot-product attention, all H heads in one grid step ----
    # contraction over d expressed directly: no materialized k transpose
    s = jnp.einsum('hqd,hkd->hqk', qh, kh, preferred_element_type=jnp.float32)
    s_max = jnp.max(s, axis=-1, keepdims=True)
    p = jnp.exp(s - s_max)
    denom = jnp.sum(p, axis=-1, keepdims=True)
    # exact reciprocal keeps the strict 1e-4 match with the f32 reference;
    # pl.reciprocal(..., approx=True) would move this onto the otherwise-idle EUP slot.
    att = p * pl.reciprocal(denom, approx=False)
    att_ref[0] = att                              # permuted row/col order; fixed in wrapper
    ctx_h = jnp.einsum('hqk,hkd->hqd', att.astype(mxu_dtype), vh,
                       preferred_element_type=jnp.float32)

    # ---- 4. faithful torch context.view(B, S, D): pure block-slice reassembly ----
    # ctx[h*r + a, u*d:(u+1)*d] == ctx_h_permuted[h, u*r + a, :]
    for h in range(H):
        for u in range(H):
            ctx_scr[h * r:(h + 1) * r, u * d:(u + 1) * d] = ctx_h[h, u * r:(u + 1) * r, :]

    # ---- 5. final linear + residual + LayerNorm on the resident lane-dense (S, D) block ----
    y = jnp.dot(ctx_scr[...].astype(mxu_dtype), wf_ref[...].astype(mxu_dtype),
                preferred_element_type=jnp.float32) + bf_ref[...]
    z = x + y                                     # residual = query input
    mean = jnp.mean(z, axis=-1, keepdims=True)
    var = jnp.mean((z - mean) ** 2, axis=-1, keepdims=True)
    out_ref[0] = (z - mean) * jax.lax.rsqrt(var + eps) * g_ref[...] + beta_ref[...]


# ---------------------------------------------------------------------------
# Wrapper
# ---------------------------------------------------------------------------
def multi_head_self_attention(x, params, *, num_heads, mxu_dtype=jnp.float32):
    """Self-attention MultiHeadAttention forward (key = value = query = x), exactly as
    used by EncoderLayer inside TransformerTime.  Returns (output, attention)."""
    B, S, D = x.shape
    H = num_heads
    assert D % H == 0, "model_dim must be divisible by num_heads"
    assert S % H == 0, "fused head split requires seq_len % num_heads == 0"
    d = D // H
    r = S // H
    # torch: scale = (key.size(-1) // num_heads) ** (-0.5)   (integer floor-div)
    scale = float((d // num_heads) ** (-0.5))
    f32 = jnp.float32

    # concatenate the three projection weights -> one (D, 3D) matmul inside the kernel
    w_qkv = jnp.concatenate([params["Wq"], params["Wk"], params["Wv"]], axis=1)
    b_qkv = jnp.concatenate([params["bq"], params["bk"], params["bv"]], axis=1)

    act_spec = pl.BlockSpec((1, S, D), lambda b: (b, 0, 0))
    att_spec = pl.BlockSpec((1, H, S, S), lambda b: (b, 0, 0, 0))

    out, att_perm = pl.pallas_call(
        functools.partial(fused_mha_kernel, num_heads=H, scale=scale, eps=1e-5,
                          mxu_dtype=mxu_dtype),
        grid=(B,),
        in_specs=[act_spec,
                  pl.BlockSpec((D, 3 * D), lambda b: (0, 0)),
                  pl.BlockSpec((1, 3 * D), lambda b: (0, 0)),
                  pl.BlockSpec((D, D), lambda b: (0, 0)),
                  pl.BlockSpec((1, D), lambda b: (0, 0)),
                  pl.BlockSpec((1, D), lambda b: (0, 0)),
                  pl.BlockSpec((1, D), lambda b: (0, 0))],
        out_specs=(act_spec, att_spec),
        out_shape=(jax.ShapeDtypeStruct((B, S, D), f32),
                   jax.ShapeDtypeStruct((B, H, S, S), f32)),
        scratch_shapes=[pltpu.VMEM((H, S, d), f32),
                        pltpu.VMEM((H, S, d), f32),
                        pltpu.VMEM((H, S, d), f32),
                        pltpu.VMEM((S, D), f32)],
        compiler_params=pltpu.CompilerParams(dimension_semantics=("parallel",)),
    )(x, w_qkv, b_qkv, params["Wf"], params["bf"], params["gamma"], params["beta"])

    # Undo the in-kernel head row/col permutation so the returned attention matches the
    # torch layout:  att[b*H+h, a*H+u, c*H+w] = att_perm[b, h, u*r+a, w*r+c]
    att = (att_perm.reshape(B, H, H, r, H, r)
                   .transpose(0, 1, 3, 2, 5, 4)
                   .reshape(B * H, S, S))
    return out, att


# ---------------------------------------------------------------------------
# Pure-JAX reference (mirrors the PyTorch forward exactly) for self-check
# ---------------------------------------------------------------------------
def reference(key, value, query, params, *, num_heads):
    B, S, D = query.shape
    d = D // num_heads
    residual = query
    k = key @ params["Wk"] + params["bk"][0]
    v = value @ params["Wv"] + params["bv"][0]
    q = query @ params["Wq"] + params["bq"][0]
    k = k.reshape(B * num_heads, S, d)
    v = v.reshape(B * num_heads, S, d)
    q = q.reshape(B * num_heads, S, d)
    scale = (d // num_heads) ** (-0.5)
    att = jnp.einsum("bij,bkj->bik", q, k) * scale
    att = jax.nn.softmax(att, axis=2)
    ctx = jnp.einsum("bij,bjk->bik", att, v).reshape(B, S, D)
    out = ctx @ params["Wf"] + params["bf"][0]
    z = residual + out
    mean = jnp.mean(z, axis=-1, keepdims=True)
    var = jnp.mean((z - mean) ** 2, axis=-1, keepdims=True)
    out = (z - mean) / jnp.sqrt(var + 1e-5) * params["gamma"][0] + params["beta"][0]
    return out, att


if __name__ == "__main__":
    B, S, D, H = 2, 8, 32, 4  # batch, seq, model_dim, num_heads (dim_per_head = 8)
    rng = jax.random.PRNGKey(0)
    ks = jax.random.split(rng, 10)
    sc = 1.0 / jnp.sqrt(D)

    params = {
        "Wq": jax.random.normal(ks[0], (D, D), jnp.float32) * sc,
        "Wk": jax.random.normal(ks[1], (D, D), jnp.float32) * sc,
        "Wv": jax.random.normal(ks[2], (D, D), jnp.float32) * sc,
        "Wf": jax.random.normal(ks[3], (D, D), jnp.float32) * sc,
        "bq": jax.random.normal(ks[4], (1, D), jnp.float32) * 0.1,
        "bk": jax.random.normal(ks[5], (1, D), jnp.float32) * 0.1,
        "bv": jax.random.normal(ks[6], (1, D), jnp.float32) * 0.1,
        "bf": jax.random.normal(ks[7], (1, D), jnp.float32) * 0.1,
        "gamma": jnp.ones((1, D), jnp.float32),   # PyTorch LayerNorm default init
        "beta": jnp.zeros((1, D), jnp.float32),
    }

    # EncoderLayer calls self.attention(inputs, inputs, inputs): self-attention input.
    x = jax.random.normal(ks[8], (B, S, D), jnp.float32)

    out, att = multi_head_self_attention(x, params, num_heads=H)
    out = jax.block_until_ready(out)
    att = jax.block_until_ready(att)

    out_ref, att_ref = reference(x, x, x, params, num_heads=H)
    assert out.shape == (B, S, D) and att.shape == (B * H, S, S)
    assert jnp.allclose(out, out_ref, rtol=1e-4, atol=1e-4)
    assert jnp.allclose(att, att_ref, rtol=1e-4, atol=1e-4)
    print("KERNEL_OK")
</pallas_src>

<mosaic_0001>
module attributes {stable_mosaic.version = 11 : i64} {
  func.func @fused_mha_kernel(%arg0: i32, %arg1: memref<1x8x32xf32, #tpu.memory_space<vmem>>, %arg2: memref<32x96xf32, #tpu.memory_space<vmem>>, %arg3: memref<1x96xf32, #tpu.memory_space<vmem>>, %arg4: memref<32x32xf32, #tpu.memory_space<vmem>>, %arg5: memref<1x32xf32, #tpu.memory_space<vmem>>, %arg6: memref<1x32xf32, #tpu.memory_space<vmem>>, %arg7: memref<1x32xf32, #tpu.memory_space<vmem>>, %arg8: memref<1x8x32xf32, #tpu.memory_space<vmem>>, %arg9: memref<1x4x8x8xf32, #tpu.memory_space<vmem>>, %arg10: memref<4x8x8xf32, #tpu.memory_space<vmem>>, %arg11: memref<4x8x8xf32, #tpu.memory_space<vmem>>, %arg12: memref<4x8x8xf32, #tpu.memory_space<vmem>>, %arg13: memref<8x32xf32, #tpu.memory_space<vmem>>) attributes {dimension_semantics = [#tpu.dimension_semantics<parallel>], iteration_bounds = array<i64: 2>, scalar_prefetch = 0 : i64, scratch_operands = 4 : i64, tpu.core_type = #tpu.core_type<tc>, window_params = [{transform_indices = @transform_0, window_bounds = array<i64: 1, 8, 32>}, {pipeline_mode = #tpu.pipeline_mode<synchronous>, transform_indices = @transform_1, window_bounds = array<i64: 32, 96>}, {pipeline_mode = #tpu.pipeline_mode<synchronous>, transform_indices = @transform_2, window_bounds = array<i64: 1, 96>}, {pipeline_mode = #tpu.pipeline_mode<synchronous>, transform_indices = @transform_3, window_bounds = array<i64: 32, 32>}, {pipeline_mode = #tpu.pipeline_mode<synchronous>, transform_indices = @transform_4, window_bounds = array<i64: 1, 32>}, {pipeline_mode = #tpu.pipeline_mode<synchronous>, transform_indices = @transform_5, window_bounds = array<i64: 1, 32>}, {pipeline_mode = #tpu.pipeline_mode<synchronous>, transform_indices = @transform_6, window_bounds = array<i64: 1, 32>}, {transform_indices = @transform_7, window_bounds = array<i64: 1, 8, 32>}, {transform_indices = @transform_8, window_bounds = array<i64: 1, 4, 8, 8>}]} {
    %c0 = arith.constant 0 : index
    %c0_0 = arith.constant 0 : index
    %c0_1 = arith.constant 0 : index
    %0 = vector.load %arg1[%c0, %c0_0, %c0_1] : memref<1x8x32xf32, #tpu.memory_space<vmem>>, vector<1x8x32xf32>
    %1 = vector.shape_cast %0 : vector<1x8x32xf32> to vector<8x32xf32>
    %c0_2 = arith.constant 0 : index
    %c0_3 = arith.constant 0 : index
    %2 = vector.load %arg2[%c0_2, %c0_3] : memref<32x96xf32, #tpu.memory_space<vmem>>, vector<32x96xf32>
    %cst = arith.constant dense<0.000000e+00> : vector<8x96xf32>
    %3 = tpu.matmul %1, %2, %cst {dimension_numbers = #tpu.dot_dimension_numbers<[1], [0], [0], [1], [0, 0, 1, 1], [], []>} : vector<8x32xf32>, vector<32x96xf32>, vector<8x96xf32> -> vector<8x96xf32>
    %c0_4 = arith.constant 0 : index
    %c0_5 = arith.constant 0 : index
    %4 = vector.load %arg3[%c0_4, %c0_5] : memref<1x96xf32, #tpu.memory_space<vmem>>, vector<1x96xf32>
    %5 = vector.broadcast %4 : vector<1x96xf32> to vector<8x96xf32>
    %6 = arith.addf %3, %5 : vector<8x96xf32>
    %7 = vector.extract_strided_slice %6 {offsets = [0, 0], sizes = [8, 32], strides = [1, 1]} : vector<8x96xf32> to vector<8x32xf32>
    %cst_6 = arith.constant 0.707106769 : f32
    %8 = vector.broadcast %cst_6 : f32 to vector<8x32xf32>
    %9 = arith.mulf %7, %8 : vector<8x32xf32>
    %10 = vector.extract_strided_slice %6 {offsets = [0, 32], sizes = [8, 32], strides = [1, 1]} : vector<8x96xf32> to vector<8x32xf32>
    %11 = vector.extract_strided_slice %6 {offsets = [0, 64], sizes = [8, 32], strides = [1, 1]} : vector<8x96xf32> to vector<8x32xf32>
    %12 = vector.extract_strided_slice %9 {offsets = [0, 0], sizes = [2, 8], strides = [1, 1]} : vector<8x32xf32> to vector<2x8xf32>
    %c0_7 = arith.constant 0 : index
    %c0_8 = arith.constant 0 : index
    %c0_9 = arith.constant 0 : index
    %13 = vector.load %arg10[%c0_7, %c0_8, %c0_9] : memref<4x8x8xf32, #tpu.memory_space<vmem>>, vector<1x2x8xf32>
    %14 = vector.shape_cast %13 : vector<1x2x8xf32> to vector<2x8xf32>
    %15 = vector.shape_cast %12 : vector<2x8xf32> to vector<1x2x8xf32>
    tpu.vector_store %arg10[%c0_7, %c0_8, %c0_9], %15 {strides = array<i32>} : memref<4x8x8xf32, #tpu.memory_space<vmem>>, vector<1x2x8xf32>,
    %16 = vector.extract_strided_slice %10 {offsets = [0, 0], sizes = [2, 8], strides = [1, 1]} : vector<8x32xf32> to vector<2x8xf32>
    %c0_10 = arith.constant 0 : index
    %c0_11 = arith.constant 0 : index
    %c0_12 = arith.constant 0 : index
    %17 = vector.load %arg11[%c0_10, %c0_11, %c0_12] : memref<4x8x8xf32, #tpu.memory_space<vmem>>, vector<1x2x8xf32>
    %18 = vector.shape_cast %17 : vector<1x2x8xf32> to vector<2x8xf32>
    %19 = vector.shape_cast %16 : vector<2x8xf32> to vector<1x2x8xf32>
    tpu.vector_store %arg11[%c0_10, %c0_11, %c0_12], %19 {strides = array<i32>} : memref<4x8x8xf32, #tpu.memory_space<vmem>>, vector<1x2x8xf32>,
    %20 = vector.extract_strided_slice %11 {offsets = [0, 0], sizes = [2, 8], strides = [1, 1]} : vector<8x32xf32> to vector<2x8xf32>
    %c0_13 = arith.constant 0 : index
    %c0_14 = arith.constant 0 : index
    %c0_15 = arith.constant 0 : index
    %21 = vector.load %arg12[%c0_13, %c0_14, %c0_15] : memref<4x8x8xf32, #tpu.memory_space<vmem>>, vector<1x2x8xf32>
    %22 = vector.shape_cast %21 : vector<1x2x8xf32> to vector<2x8xf32>
    %23 = vector.shape_cast %20 : vector<2x8xf32> to vector<1x2x8xf32>
    tpu.vector_store %arg12[%c0_13, %c0_14, %c0_15], %23 {strides = array<i32>} : memref<4x8x8xf32, #tpu.memory_space<vmem>>, vector<1x2x8xf32>,
    %24 = vector.extract_strided_slice %9 {offsets = [0, 8], sizes = [2, 8], strides = [1, 1]} : vector<8x32xf32> to vector<2x8xf32>
    %c0_16 = arith.constant 0 : index
    %c2 = arith.constant 2 : index
    %c0_17 = arith.constant 0 : index
    %25 = vector.load %arg10[%c0_16, %c2, %c0_17] : memref<4x8x8xf32, #tpu.memory_space<vmem>>, vector<1x2x8xf32>
    %26 = vector.shape_cast %25 : vector<1x2x8xf32> to vector<2x8xf32>
    %27 = vector.shape_cast %24 : vector<2x8xf32> to vector<1x2x8xf32>
    tpu.vector_store %arg10[%c0_16, %c2, %c0_17], %27 {strides = array<i32>} : memref<4x8x8xf32, #tpu.memory_space<vmem>>, vector<1x2x8xf32>,
    %28 = vector.extract_strided_slice %10 {offsets = [0, 8], sizes = [2, 8], strides = [1, 1]} : vector<8x32xf32> to vector<2x8xf32>
    %c0_18 = arith.constant 0 : index
    %c2_19 = arith.constant 2 : index
    %c0_20 = arith.constant 0 : index
    %29 = vector.load %arg11[%c0_18, %c2_19, %c0_20] : memref<4x8x8xf32, #tpu.memory_space<vmem>>, vector<1x2x8xf32>
    %30 = vector.shape_cast %29 : vector<1x2x8xf32> to vector<2x8xf32>
    %31 = vector.shape_cast %28 : vector<2x8xf32> to vector<1x2x8xf32>
    tpu.vector_store %arg11[%c0_18, %c2_19, %c0_20], %31 {strides = array<i32>} : memref<4x8x8xf32, #tpu.memory_space<vmem>>, vector<1x2x8xf32>,
    %32 = vector.extract_strided_slice %11 {offsets = [0, 8], sizes = [2, 8], strides = [1, 1]} : vector<8x32xf32> to vector<2x8xf32>
    %c0_21 = arith.constant 0 : index
    %c2_22 = arith.constant 2 : index
    %c0_23 = arith.constant 0 : index
    %33 = vector.load %arg12[%c0_21, %c2_22, %c0_23] : memref<4x8x8xf32, #tpu.memory_space<vmem>>, vector<1x2x8xf32>
    %34 = vector.shape_cast %33 : vector<1x2x8xf32> to vector<2x8xf32>
    %35 = vector.shape_cast %32 : vector<2x8xf32> to vector<1x2x8xf32>
    tpu.vector_store %arg12[%c0_21, %c2_22, %c0_23], %35 {strides = array<i32>} : memref<4x8x8xf32, #tpu.memory_space<vmem>>, vector<1x2x8xf32>,
    %36 = vector.extract_strided_slice %9 {offsets = [0, 16], sizes = [2, 8], strides = [1, 1]} : vector<8x32xf32> to vector<2x8xf32>
    %c0_24 = arith.constant 0 : index
    %c4 = arith.constant 4 : index
    %c0_25 = arith.constant 0 : index
    %37 = vector.load %arg10[%c0_24, %c4, %c0_25] : memref<4x8x8xf32, #tpu.memory_space<vmem>>, vector<1x2x8xf32>
    %38 = vector.shape_cast %37 : vector<1x2x8xf32> to vector<2x8xf32>
    %39 = vector.shape_cast %36 : vector<2x8xf32> to vector<1x2x8xf32>
    tpu.vector_store %arg10[%c0_24, %c4, %c0_25], %39 {strides = array<i32>} : memref<4x8x8xf32, #tpu.memory_space<vmem>>, vector<1x2x8xf32>,
    %40 = vector.extract_strided_slice %10 {offsets = [0, 16], sizes = [2, 8], strides = [1, 1]} : vector<8x32xf32> to vector<2x8xf32>
    %c0_26 = arith.constant 0 : index
    %c4_27 = arith.constant 4 : index
    %c0_28 = arith.constant 0 : index
    %41 = vector.load %arg11[%c0_26, %c4_27, %c0_28] : memref<4x8x8xf32, #tpu.memory_space<vmem>>, vector<1x2x8xf32>
    %42 = vector.shape_cast %41 : vector<1x2x8xf32> to vector<2x8xf32>
    %43 = vector.shape_cast %40 : vector<2x8xf32> to vector<1x2x8xf32>
    tpu.vector_store %arg11[%c0_26, %c4_27, %c0_28], %43 {strides = array<i32>} : memref<4x8x8xf32, #tpu.memory_space<vmem>>, vector<1x2x8xf32>,
    %44 = vector.extract_strided_slice %11 {offsets = [0, 16], sizes = [2, 8], strides = [1, 1]} : vector<8x32xf32> to vector<2x8xf32>
    %c0_29 = arith.constant 0 : index
    %c4_30 = arith.constant 4 : index
    %c0_31 = arith.constant 0 : index
    %45 = vector.load %arg12[%c0_29, %c4_30, %c0_31] : memref<4x8x8xf32, #tpu.memory_space<vmem>>, vector<1x2x8xf32>
    %46 = vector.shape_cast %45 : vector<1x2x8xf32> to vector<2x8xf32>
    %47 = vector.shape_cast %44 : vector<2x8xf32> to vector<1x2x8xf32>
    tpu.vector_store %arg12[%c0_29, %c4_30, %c0_31], %47 {strides = array<i32>} : memref<4x8x8xf32, #tpu.memory_space<vmem>>, vector<1x2x8xf32>,
    %48 = vector.extract_strided_slice %9 {offsets = [0, 24], sizes = [2, 8], strides = [1, 1]} : vector<8x32xf32> to vector<2x8xf32>
    %c0_32 = arith.constant 0 : index
    %c6 = arith.constant 6 : index
    %c0_33 = arith.constant 0 : index
    %49 = vector.load %arg10[%c0_32, %c6, %c0_33] : memref<4x8x8xf32, #tpu.memory_space<vmem>>, vector<1x2x8xf32>
    %50 = vector.shape_cast %49 : vector<1x2x8xf32> to vector<2x8xf32>
    %51 = vector.shape_cast %48 : vector<2x8xf32> to vector<1x2x8xf32>
    tpu.vector_store %arg10[%c0_32, %c6, %c0_33], %51 {strides = array<i32>} : memref<4x8x8xf32, #tpu.memory_space<vmem>>, vector<1x2x8xf32>,
    %52 = vector.extract_strided_slice %10 {offsets = [0, 24], sizes = [2, 8], strides = [1, 1]} : vector<8x32xf32> to vector<2x8xf32>
    %c0_34 = arith.constant 0 : index
    %c6_35 = arith.constant 6 : index
    %c0_36 = arith.constant 0 : index
    %53 = vector.load %arg11[%c0_34, %c6_35, %c0_36] : memref<4x8x8xf32, #tpu.memory_space<vmem>>, vector<1x2x8xf32>
    %54 = vector.shape_cast %53 : vector<1x2x8xf32> to vector<2x8xf32>
    %55 = vector.shape_cast %52 : vector<2x8xf32> to vector<1x2x8xf32>
    tpu.vector_store %arg11[%c0_34, %c6_35, %c0_36], %55 {strides = array<i32>} : memref<4x8x8xf32, #tpu.memory_space<vmem>>, vector<1x2x8xf32>,
    %56 = vector.extract_strided_slice %11 {offsets = [0, 24], sizes = [2, 8], strides = [1, 1]} : vector<8x32xf32> to vector<2x8xf32>
    %c0_37 = arith.constant 0 : index
    %c6_38 = arith.constant 6 : index
    %c0_39 = arith.constant 0 : index
    %57 = vector.load %arg12[%c0_37, %c6_38, %c0_39] : memref<4x8x8xf32, #tpu.memory_space<vmem>>, vector<1x2x8xf32>
    %58 = vector.shape_cast %57 : vector<1x2x8xf32> to vector<2x8xf32>
    %59 = vector.shape_cast %56 : vector<2x8xf32> to vector<1x2x8xf32>
    tpu.vector_store %arg12[%c0_37, %c6_38, %c0_39], %59 {strides = array<i32>} : memref<4x8x8xf32, #tpu.memory_space<vmem>>, vector<1x2x8xf32>,
    %60 = vector.extract_strided_slice %9 {offsets = [2, 0], sizes = [2, 8], strides = [1, 1]} : vector<8x32xf32> to vector<2x8xf32>
    %c1 = arith.constant 1 : index
    %c0_40 = arith.constant 0 : index
    %c0_41 = arith.constant 0 : index
    %61 = vector.load %arg10[%c1, %c0_40, %c0_41] : memref<4x8x8xf32, #tpu.memory_space<vmem>>, vector<1x2x8xf32>
    %62 = vector.shape_cast %61 : vector<1x2x8xf32> to vector<2x8xf32>
    %63 = vector.shape_cast %60 : vector<2x8xf32> to vector<1x2x8xf32>
    tpu.vector_store %arg10[%c1, %c0_40, %c0_41], %63 {strides = array<i32>} : memref<4x8x8xf32, #tpu.memory_space<vmem>>, vector<1x2x8xf32>,
    %64 = vector.extract_strided_slice %10 {offsets = [2, 0], sizes = [2, 8], strides = [1, 1]} : vector<8x32xf32> to vector<2x8xf32>
    %c1_42 = arith.constant 1 : index
    %c0_43 = arith.constant 0 : index
    %c0_44 = arith.constant 0 : index
    %65 = vector.load %arg11[%c1_42, %c0_43, %c0_44] : memref<4x8x8xf32, #tpu.memory_space<vmem>>, vector<1x2x8xf32>
    %66 = vector.shape_cast %65 : vector<1x2x8xf32> to vector<2x8xf32>
    %67 = vector.shape_cast %64 : vector<2x8xf32> to vector<1x2x8xf32>
    tpu.vector_store %arg11[%c1_42, %c0_43, %c0_44], %67 {strides = array<i32>} : memref<4x8x8xf32, #tpu.memory_space<vmem>>, vector<1x2x8xf32>,
    %68 = vector.extract_strided_slice %11 {offsets = [2, 0], sizes = [2, 8], strides = [1, 1]} : vector<8x32xf32> to vector<2x8xf32>
    %c1_45 = arith.constant 1 : index
    %c0_46 = arith.constant 0 : index
    %c0_47 = arith.constant 0 : index
    %69 = vector.load %arg12[%c1_45, %c0_46, %c0_47] : memref<4x8x8xf32, #tpu.memory_space<vmem>>, vector<1x2x8xf32>
    %70 = vector.shape_cast %69 : vector<1x2x8xf32> to vector<2x8xf32>
    %71 = vector.shape_cast %68 : vector<2x8xf32> to vector<1x2x8xf32>
    tpu.vector_store %arg12[%c1_45, %c0_46, %c0_47], %71 {strides = array<i32>} : memref<4x8x8xf32, #tpu.memory_space<vmem>>, vector<1x2x8xf32>,
    %72 = vector.extract_strided_slice %9 {offsets = [2, 8], sizes = [2, 8], strides = [1, 1]} : vector<8x32xf32> to vector<2x8xf32>
    %c1_48 = arith.constant 1 : index
    %c2_49 = arith.constant 2 : index
    %c0_50 = arith.constant 0 : index
    %73 = vector.load %arg10[%c1_48, %c2_49, %c0_50] : memref<4x8x8xf32, #tpu.memory_space<vmem>>, vector<1x2x8xf32>
    %74 = vector.shape_cast %73 : vector<1x2x8xf32> to vector<2x8xf32>
    %75 = vector.shape_cast %72 : vector<2x8xf32> to vector<1x2x8xf32>
    tpu.vector_store %arg10[%c1_48, %c2_49, %c0_50], %75 {strides = array<i32>} : memref<4x8x8xf32, #tpu.memory_space<vmem>>, vector<1x2x8xf32>,
    %76 = vector.extract_strided_slice %10 {offsets = [2, 8], sizes = [2, 8], strides = [1, 1]} : vector<8x32xf32> to vector<2x8xf32>
    %c1_51 = arith.constant 1 : index
    %c2_52 = arith.constant 2 : index
    %c0_53 = arith.constant 0 : index
    %77 = vector.load %arg11[%c1_51, %c2_52, %c0_53] : memref<4x8x8xf32, #tpu.memory_space<vmem>>, vector<1x2x8xf32>
    %78 = vector.shape_cast %77 : vector<1x2x8xf32> to vector<2x8xf32>
    %79 = vector.shape_cast %76 : vector<2x8xf32> to vector<1x2x8xf32>
    tpu.vector_store %arg11[%c1_51, %c2_52, %c0_53], %79 {strides = array<i32>} : memref<4x8x8xf32, #tpu.memory_space<vmem>>, vector<1x2x8xf32>,
    %80 = vector.extract_strided_slice %11 {offsets = [2, 8], sizes = [2, 8], strides = [1, 1]} : vector<8x32xf32> to vector<2x8xf32>
    %c1_54 = arith.constant 1 : index
    %c2_55 = arith.constant 2 : index
    %c0_56 = arith.constant 0 : index
    %81 = vector.load %arg12[%c1_54, %c2_55, %c0_56] : memref<4x8x8xf32, #tpu.memory_space<vmem>>, vector<1x2x8xf32>
    %82 = vector.shape_cast %81 : vector<1x2x8xf32> to vector<2x8xf32>
    %83 = vector.shape_cast %80 : vector<2x8xf32> to vector<1x2x8xf32>
    tpu.vector_store %arg12[%c1_54, %c2_55, %c0_56], %83 {strides = array<i32>} : memref<4x8x8xf32, #tpu.memory_space<vmem>>, vector<1x2x8xf32>,
    %84 = vector.extract_strided_slice %9 {offsets = [2, 16], sizes = [2, 8], strides = [1, 1]} : vector<8x32xf32> to vector<2x8xf32>
    %c1_57 = arith.constant 1 : index
    %c4_58 = arith.constant 4 : index
    %c0_59 = arith.constant 0 : index
    %85 = vector.load %arg10[%c1_57, %c4_58, %c0_59] : memref<4x8x8xf32, #tpu.memory_space<vmem>>, vector<1x2x8xf32>
    %86 = vector.shape_cast %85 : vector<1x2x8xf32> to vector<2x8xf32>
    %87 = vector.shape_cast %84 : vector<2x8xf32> to vector<1x2x8xf32>
    tpu.vector_store %arg10[%c1_57, %c4_58, %c0_59], %87 {strides = array<i32>} : memref<4x8x8xf32, #tpu.memory_space<vmem>>, vector<1x2x8xf32>,
    %88 = vector.extract_strided_slice %10 {offsets = [2, 16], sizes = [2, 8], strides = [1, 1]} : vector<8x32xf32> to vector<2x8xf32>
    %c1_60 = arith.constant 1 : index
    %c4_61 = arith.constant 4 : index
    %c0_62 = arith.constant 0 : index
    %89 = vector.load %arg11[%c1_60, %c4_61, %c0_62] : memref<4x8x8xf32, #tpu.memory_space<vmem>>, vector<1x2x8xf32>
    %90 = vector.shape_cast %89 : vector<1x2x8xf32> to vector<2x8xf32>
    %91 = vector.shape_cast %88 : vector<2x8xf32> to vector<1x2x8xf32>
    tpu.vector_store %arg11[%c1_60, %c4_61, %c0_62], %91 {strides = array<i32>} : memref<4x8x8xf32, #tpu.memory_space<vmem>>, vector<1x2x8xf32>,
    %92 = vector.extract_strided_slice %11 {offsets = [2, 16], sizes = [2, 8], strides = [1, 1]} : vector<8x32xf32> to vector<2x8xf32>
    %c1_63 = arith.constant 1 : index
    %c4_64 = arith.constant 4 : index
    %c0_65 = arith.constant 0 : index
    %93 = vector.load %arg12[%c1_63, %c4_64, %c0_65] : memref<4x8x8xf32, #tpu.memory_space<vmem>>, vector<1x2x8xf32>
    %94 = vector.shape_cast %93 : vector<1x2x8xf32> to vector<2x8xf32>
    %95 = vector.shape_cast %92 : vector<2x8xf32> to vector<1x2x8xf32>
    tpu.vector_store %arg12[%c1_63, %c4_64, %c0_65], %95 {strides = array<i32>} : memref<4x8x8xf32, #tpu.memory_space<vmem>>, vector<1x2x8xf32>,
    %96 = vector.extract_strided_slice %9 {offsets = [2, 24], sizes = [2, 8], strides = [1, 1]} : vector<8x32xf32> to vector<2x8xf32>
    %c1_66 = arith.constant 1 : index
    %c6_67 = arith.constant 6 : index
    %c0_68 = arith.constant 0 : index
    %97 = vector.load %arg10[%c1_66, %c6_67, %c0_68] : memref<4x8x8xf32, #tpu.memory_space<vmem>>, vector<1x2x8xf32>
    %98 = vector.shape_cast %97 : vector<1x2x8xf32> to vector<2x8xf32>
    %99 = vector.shape_cast %96 : vector<2x8xf32> to vector<1x2x8xf32>
    tpu.vector_store %arg10[%c1_66, %c6_67, %c0_68], %99 {strides = array<i32>} : memref<4x8x8xf32, #tpu.memory_space<vmem>>, vector<1x2x8xf32>,
    %100 = vector.extract_strided_slice %10 {offsets = [2, 24], sizes = [2, 8], strides = [1, 1]} : vector<8x32xf32> to vector<2x8xf32>
    %c1_69 = arith.constant 1 : index
    %c6_70 = arith.constant 6 : index
    %c0_71 = arith.constant 0 : index
    %101 = vector.load %arg11[%c1_69, %c6_70, %c0_71] : memref<4x8x8xf32, #tpu.memory_space<vmem>>, vector<1x2x8xf32>
    %102 = vector.shape_cast %101 : vector<1x2x8xf32> to vector<2x8xf32>
    %103 = vector.shape_cast %100 : vector<2x8xf32> to vector<1x2x8xf32>
    tpu.vector_store %arg11[%c1_69, %c6_70, %c0_71], %103 {strides = array<i32>} : memref<4x8x8xf32, #tpu.memory_space<vmem>>, vector<1x2x8xf32>,
    %104 = vector.extract_strided_slice %11 {offsets = [2, 24], sizes = [2, 8], strides = [1, 1]} : vector<8x32xf32> to vector<2x8xf32>
    %c1_72 = arith.constant 1 : index
    %c6_73 = arith.constant 6 : index
    %c0_74 = arith.constant 0 : index
    %105 = vector.load %arg12[%c1_72, %c6_73, %c0_74] : memref<4x8x8xf32, #tpu.memory_space<vmem>>, vector<1x2x8xf32>
    %106 = vector.shape_cast %105 : vector<1x2x8xf32> to vector<2x8xf32>
    %107 = vector.shape_cast %104 : vector<2x8xf32> to vector<1x2x8xf32>
    tpu.vector_store %arg12[%c1_72, %c6_73, %c0_74], %107 {strides = array<i32>} : memref<4x8x8xf32, #tpu.memory_space<vmem>>, vector<1x2x8xf32>,
    %108 = vector.extract_strided_slice %9 {offsets = [4, 0], sizes = [2, 8], strides = [1, 1]} : vector<8x32xf32> to vector<2x8xf32>
    %c2_75 = arith.constant 2 : index
    %c0_76 = arith.constant 0 : index
    %c0_77 = arith.constant 0 : index
    %109 = vector.load %arg10[%c2_75, %c0_76, %c0_77] : memref<4x8x8xf32, #tpu.memory_space<vmem>>, vector<1x2x8xf32>
    %110 = vector.shape_cast %109 : vector<1x2x8xf32> to vector<2x8xf32>
    %111 = vector.shape_cast %108 : vector<2x8xf32> to vector<1x2x8xf32>
    tpu.vector_store %arg10[%c2_75, %c0_76, %c0_77], %111 {strides = array<i32>} : memref<4x8x8xf32, #tpu.memory_space<vmem>>, vector<1x2x8xf32>,
    %112 = vector.extract_strided_slice %10 {offsets = [4, 0], sizes = [2, 8], strides = [1, 1]} : vector<8x32xf32> to vector<2x8xf32>
    %c2_78 = arith.constant 2 : index
    %c0_79 = arith.constant 0 : index
    %c0_80 = arith.constant 0 : index
    %113 = vector.load %arg11[%c2_78, %c0_79, %c0_80] : memref<4x8x8xf32, #tpu.memory_space<vmem>>, vector<1x2x8xf32>
    %114 = vector.shape_cast %113 : vector<1x2x8xf32> to vector<2x8xf32>
    %115 = vector.shape_cast %112 : vector<2x8xf32> to vector<1x2x8xf32>
    tpu.vector_store %arg11[%c2_78, %c0_79, %c0_80], %115 {strides = array<i32>} : memref<4x8x8xf32, #tpu.memory_space<vmem>>, vector<1x2x8xf32>,
    %116 = vector.extract_strided_slice %11 {offsets = [4, 0], sizes = [2, 8], strides = [1, 1]} : vector<8x32xf32> to vector<2x8xf32>
    %c2_81 = arith.constant 2 : index
    %c0_82 = arith.constant 0 : index
    %c0_83 = arith.constant 0 : index
    %117 = vector.load %arg12[%c2_81, %c0_82, %c0_83] : memref<4x8x8xf32, #tpu.memory_space<vmem>>, vector<1x2x8xf32>
    %118 = vector.shape_cast %117 : vector<1x2x8xf32> to vector<2x8xf32>
    %119 = vector.shape_cast %116 : vector<2x8xf32> to vector<1x2x8xf32>
    tpu.vector_store %arg12[%c2_81, %c0_82, %c0_83], %119 {strides = array<i32>} : memref<4x8x8xf32, #tpu.memory_space<vmem>>, vector<1x2x8xf32>,
    %120 = vector.extract_strided_slice %9 {offsets = [4, 8], sizes = [2, 8], strides = [1, 1]} : vector<8x32xf32> to vector<2x8xf32>
    %c2_84 = arith.constant 2 : index
    %c2_85 = arith.constant 2 : index
    %c0_86 = arith.constant 0 : index
    %121 = vector.load %arg10[%c2_84, %c2_85, %c0_86] : memref<4x8x8xf32, #tpu.memory_space<vmem>>, vector<1x2x8xf32>
    %122 = vector.shape_cast %121 : vector<1x2x8xf32> to vector<2x8xf32>
    %123 = vector.shape_cast %120 : vector<2x8xf32> to vector<1x2x8xf32>
    tpu.vector_store %arg10[%c2_84, %c2_85, %c0_86], %123 {strides = array<i32>} : memref<4x8x8xf32, #tpu.memory_space<vmem>>, vector<1x2x8xf32>,
    %124 = vector.extract_strided_slice %10 {offsets = [4, 8], sizes = [2, 8], strides = [1, 1]} : vector<8x32xf32> to vector<2x8xf32>
    %c2_87 = arith.constant 2 : index
    %c2_88 = arith.constant 2 : index
    %c0_89 = arith.constant 0 : index
    %125 = vector.load %arg11[%c2_87, %c2_88, %c0_89] : memref<4x8x8xf32, #tpu.memory_space<vmem>>, vector<1x2x8xf32>
    %126 = vector.shape_cast %125 : vector<1x2x8xf32> to vector<2x8xf32>
    %127 = vector.shape_cast %124 : vector<2x8xf32> to vector<1x2x8xf32>
    tpu.vector_store %arg11[%c2_87, %c2_88, %c0_89], %127 {strides = array<i32>} : memref<4x8x8xf32, #tpu.memory_space<vmem>>, vector<1x2x8xf32>,
    %128 = vector.extract_strided_slice %11 {offsets = [4, 8], sizes = [2, 8], strides = [1, 1]} : vector<8x32xf32> to vector<2x8xf32>
    %c2_90 = arith.constant 2 : index
    %c2_91 = arith.constant 2 : index
    %c0_92 = arith.constant 0 : index
    %129 = vector.load %arg12[%c2_90, %c2_91, %c0_92] : memref<4x8x8xf32, #tpu.memory_space<vmem>>, vector<1x2x8xf32>
    %130 = vector.shape_cast %129 : vector<1x2x8xf32> to vector<2x8xf32>
    %131 = vector.shape_cast %128 : vector<2x8xf32> to vector<1x2x8xf32>
    tpu.vector_store %arg12[%c2_90, %c2_91, %c0_92], %131 {strides = array<i32>} : memref<4x8x8xf32, #tpu.memory_space<vmem>>, vector<1x2x8xf32>,
    %132 = vector.extract_strided_slice %9 {offsets = [4, 16], sizes = [2, 8], strides = [1, 1]} : vector<8x32xf32> to vector<2x8xf32>
    %c2_93 = arith.constant 2 : index
    %c4_94 = arith.constant 4 : index
    %c0_95 = arith.constant 0 : index
    %133 = vector.load %arg10[%c2_93, %c4_94, %c0_95] : memref<4x8x8xf32, #tpu.memory_space<vmem>>, vector<1x2x8xf32>
    %134 = vector.shape_cast %133 : vector<1x2x8xf32> to vector<2x8xf32>
    %135 = vector.shape_cast %132 : vector<2x8xf32> to vector<1x2x8xf32>
    tpu.vector_store %arg10[%c2_93, %c4_94, %c0_95], %135 {strides = array<i32>} : memref<4x8x8xf32, #tpu.memory_space<vmem>>, vector<1x2x8xf32>,
    %136 = vector.extract_strided_slice %10 {offsets = [4, 16], sizes = [2, 8], strides = [1, 1]} : vector<8x32xf32> to vector<2x8xf32>
    %c2_96 = arith.constant 2 : index
    %c4_97 = arith.constant 4 : index
    %c0_98 = arith.constant 0 : index
    %137 = vector.load %arg11[%c2_96, %c4_97, %c0_98] : memref<4x8x8xf32, #tpu.memory_space<vmem>>, vector<1x2x8xf32>
    %138 = vector.shape_cast %137 : vector<1x2x8xf32> to vector<2x8xf32>
    %139 = vector.shape_cast %136 : vector<2x8xf32> to vector<1x2x8xf32>
    tpu.vector_store %arg11[%c2_96, %c4_97, %c0_98], %139 {strides = array<i32>} : memref<4x8x8xf32, #tpu.memory_space<vmem>>, vector<1x2x8xf32>,
    %140 = vector.extract_strided_slice %11 {offsets = [4, 16], sizes = [2, 8], strides = [1, 1]} : vector<8x32xf32> to vector<2x8xf32>
    %c2_99 = arith.constant 2 : index
    %c4_100 = arith.constant 4 : index
    %c0_101 = arith.constant 0 : index
    %141 = vector.load %arg12[%c2_99, %c4_100, %c0_101] : memref<4x8x8xf32, #tpu.memory_space<vmem>>, vector<1x2x8xf32>
    %142 = vector.shape_cast %141 : vector<1x2x8xf32> to vector<2x8xf32>
    %143 = vector.shape_cast %140 : vector<2x8xf32> to vector<1x2x8xf32>
    tpu.vector_store %arg12[%c2_99, %c4_100, %c0_101], %143 {strides = array<i32>} : memref<4x8x8xf32, #tpu.memory_space<vmem>>, vector<1x2x8xf32>,
    %144 = vector.extract_strided_slice %9 {offsets = [4, 24], sizes = [2, 8], strides = [1, 1]} : vector<8x32xf32> to vector<2x8xf32>
    %c2_102 = arith.constant 2 : index
    %c6_103 = arith.constant 6 : index
    %c0_104 = arith.constant 0 : index
    %145 = vector.load %arg10[%c2_102, %c6_103, %c0_104] : memref<4x8x8xf32, #tpu.memory_space<vmem>>, vector<1x2x8xf32>
    %146 = vector.shape_cast %145 : vector<1x2x8xf32> to vector<2x8xf32>
    %147 = vector.shape_cast %144 : vector<2x8xf32> to vector<1x2x8xf32>
    tpu.vector_store %arg10[%c2_102, %c6_103, %c0_104], %147 {strides = array<i32>} : memref<4x8x8xf32, #tpu.memory_space<vmem>>, vector<1x2x8xf32>,
    %148 = vector.extract_strided_slice %10 {offsets = [4, 24], sizes = [2, 8], strides = [1, 1]} : vector<8x32xf32> to vector<2x8xf32>
    %c2_105 = arith.constant 2 : index
    %c6_106 = arith.constant 6 : index
    %c0_107 = arith.constant 0 : index
    %149 = vector.load %arg11[%c2_105, %c6_106, %c0_107] : memref<4x8x8xf32, #tpu.memory_space<vmem>>, vector<1x2x8xf32>
    %150 = vector.shape_cast %149 : vector<1x2x8xf32> to vector<2x8xf32>
    %151 = vector.shape_cast %148 : vector<2x8xf32> to vector<1x2x8xf32>
    tpu.vector_store %arg11[%c2_105, %c6_106, %c0_107], %151 {strides = array<i32>} : memref<4x8x8xf32, #tpu.memory_space<vmem>>, vector<1x2x8xf32>,
    %152 = vector.extract_strided_slice %11 {offsets = [4, 24], sizes = [2, 8], strides = [1, 1]} : vector<8x32xf32> to vector<2x8xf32>
    %c2_108 = arith.constant 2 : index
    %c6_109 = arith.constant 6 : index
    %c0_110 = arith.constant 0 : index
    %153 = vector.load %arg12[%c2_108, %c6_109, %c0_110] : memref<4x8x8xf32, #tpu.memory_space<vmem>>, vector<1x2x8xf32>
    %154 = vector.shape_cast %153 : vector<1x2x8xf32> to vector<2x8xf32>
    %155 = vector.shape_cast %152 : vector<2x8xf32> to vector<1x2x8xf32>
    tpu.vector_store %arg12[%c2_108, %c6_109, %c0_110], %155 {strides = array<i32>} : memref<4x8x8xf32, #tpu.memory_space<vmem>>, vector<1x2x8xf32>,
    %156 = vector.extract_strided_slice %9 {offsets = [6, 0], sizes = [2, 8], strides = [1, 1]} : vector<8x32xf32> to vector<2x8xf32>
    %c3 = arith.constant 3 : index
    %c0_111 = arith.constant 0 : index
    %c0_112 = arith.constant 0 : index
    %157 = vector.load %arg10[%c3, %c0_111, %c0_112] : memref<4x8x8xf32, #tpu.memory_space<vmem>>, vector<1x2x8xf32>
    %158 = vector.shape_cast %157 : vector<1x2x8xf32> to vector<2x8xf32>
    %159 = vector.shape_cast %156 : vector<2x8xf32> to vector<1x2x8xf32>
    tpu.vector_store %arg10[%c3, %c0_111, %c0_112], %159 {strides = array<i32>} : memref<4x8x8xf32, #tpu.memory_space<vmem>>, vector<1x2x8xf32>,
    %160 = vector.extract_strided_slice %10 {offsets = [6, 0], sizes = [2, 8], strides = [1, 1]} : vector<8x32xf32> to vector<2x8xf32>
    %c3_113 = arith.constant 3 : index
    %c0_114 = arith.constant 0 : index
    %c0_115 = arith.constant 0 : index
    %161 = vector.load %arg11[%c3_113, %c0_114, %c0_115] : memref<4x8x8xf32, #tpu.memory_space<vmem>>, vector<1x2x8xf32>
    %162 = vector.shape_cast %161 : vector<1x2x8xf32> to vector<2x8xf32>
    %163 = vector.shape_cast %160 : vector<2x8xf32> to vector<1x2x8xf32>
    tpu.vector_store %arg11[%c3_113, %c0_114, %c0_115], %163 {strides = array<i32>} : memref<4x8x8xf32, #tpu.memory_space<vmem>>, vector<1x2x8xf32>,
    %164 = vector.extract_strided_slice %11 {offsets = [6, 0], sizes = [2, 8], strides = [1, 1]} : vector<8x32xf32> to vector<2x8xf32>
    %c3_116 = arith.constant 3 : index
    %c0_117 = arith.constant 0 : index
    %c0_118 = arith.constant 0 : index
    %165 = vector.load %arg12[%c3_116, %c0_117, %c0_118] : memref<4x8x8xf32, #tpu.memory_space<vmem>>, vector<1x2x8xf32>
    %166 = vector.shape_cast %165 : vector<1x2x8xf32> to vector<2x8xf32>
    %167 = vector.shape_cast %164 : vector<2x8xf32> to vector<1x2x8xf32>
    tpu.vector_store %arg12[%c3_116, %c0_117, %c0_118], %167 {strides = array<i32>} : memref<4x8x8xf32, #tpu.memory_space<vmem>>, vector<1x2x8xf32>,
    %168 = vector.extract_strided_slice %9 {offsets = [6, 8], sizes = [2, 8], strides = [1, 1]} : vector<8x32xf32> to vector<2x8xf32>
    %c3_119 = arith.constant 3 : index
    %c2_120 = arith.constant 2 : index
    %c0_121 = arith.constant 0 : index
    %169 = vector.load %arg10[%c3_119, %c2_120, %c0_121] : memref<4x8x8xf32, #tpu.memory_space<vmem>>, vector<1x2x8xf32>
    %170 = vector.shape_cast %169 : vector<1x2x8xf32> to vector<2x8xf32>
    %171 = vector.shape_cast %168 : vector<2x8xf32> to vector<1x2x8xf32>
    tpu.vector_store %arg10[%c3_119, %c2_120, %c0_121], %171 {strides = array<i32>} : memref<4x8x8xf32, #tpu.memory_space<vmem>>, vector<1x2x8xf32>,
    %172 = vector.extract_strided_slice %10 {offsets = [6, 8], sizes = [2, 8], strides = [1, 1]} : vector<8x32xf32> to vector<2x8xf32>
    %c3_122 = arith.constant 3 : index
    %c2_123 = arith.constant 2 : index
    %c0_124 = arith.constant 0 : index
    %173 = vector.load %arg11[%c3_122, %c2_123, %c0_124] : memref<4x8x8xf32, #tpu.memory_space<vmem>>, vector<1x2x8xf32>
    %174 = vector.shape_cast %173 : vector<1x2x8xf32> to vector<2x8xf32>
    %175 = vector.shape_cast %172 : vector<2x8xf32> to vector<1x2x8xf32>
    tpu.vector_store %arg11[%c3_122, %c2_123, %c0_124], %175 {strides = array<i32>} : memref<4x8x8xf32, #tpu.memory_space<vmem>>, vector<1x2x8xf32>,
    %176 = vector.extract_strided_slice %11 {offsets = [6, 8], sizes = [2, 8], strides = [1, 1]} : vector<8x32xf32> to vector<2x8xf32>
    %c3_125 = arith.constant 3 : index
    %c2_126 = arith.constant 2 : index
    %c0_127 = arith.constant 0 : index
    %177 = vector.load %arg12[%c3_125, %c2_126, %c0_127] : memref<4x8x8xf32, #tpu.memory_space<vmem>>, vector<1x2x8xf32>
    %178 = vector.shape_cast %177 : vector<1x2x8xf32> to vector<2x8xf32>
    %179 = vector.shape_cast %176 : vector<2x8xf32> to vector<1x2x8xf32>
    tpu.vector_store %arg12[%c3_125, %c2_126, %c0_127], %179 {strides = array<i32>} : memref<4x8x8xf32, #tpu.memory_space<vmem>>, vector<1x2x8xf32>,
    %180 = vector.extract_strided_slice %9 {offsets = [6, 16], sizes = [2, 8], strides = [1, 1]} : vector<8x32xf32> to vector<2x8xf32>
    %c3_128 = arith.constant 3 : index
    %c4_129 = arith.constant 4 : index
    %c0_130 = arith.constant 0 : index
    %181 = vector.load %arg10[%c3_128, %c4_129, %c0_130] : memref<4x8x8xf32, #tpu.memory_space<vmem>>, vector<1x2x8xf32>
    %182 = vector.shape_cast %181 : vector<1x2x8xf32> to vector<2x8xf32>
    %183 = vector.shape_cast %180 : vector<2x8xf32> to vector<1x2x8xf32>
    tpu.vector_store %arg10[%c3_128, %c4_129, %c0_130], %183 {strides = array<i32>} : memref<4x8x8xf32, #tpu.memory_space<vmem>>, vector<1x2x8xf32>,
    %184 = vector.extract_strided_slice %10 {offsets = [6, 16], sizes = [2, 8], strides = [1, 1]} : vector<8x32xf32> to vector<2x8xf32>
    %c3_131 = arith.constant 3 : index
    %c4_132 = arith.constant 4 : index
    %c0_133 = arith.constant 0 : index
    %185 = vector.load %arg11[%c3_131, %c4_132, %c0_133] : memref<4x8x8xf32, #tpu.memory_space<vmem>>, vector<1x2x8xf32>
    %186 = vector.shape_cast %185 : vector<1x2x8xf32> to vector<2x8xf32>
    %187 = vector.shape_cast %184 : vector<2x8xf32> to vector<1x2x8xf32>
    tpu.vector_store %arg11[%c3_131, %c4_132, %c0_133], %187 {strides = array<i32>} : memref<4x8x8xf32, #tpu.memory_space<vmem>>, vector<1x2x8xf32>,
    %188 = vector.extract_strided_slice %11 {offsets = [6, 16], sizes = [2, 8], strides = [1, 1]} : vector<8x32xf32> to vector<2x8xf32>
    %c3_134 = arith.constant 3 : index
    %c4_135 = arith.constant 4 : index
    %c0_136 = arith.constant 0 : index
    %189 = vector.load %arg12[%c3_134, %c4_135, %c0_136] : memref<4x8x8xf32, #tpu.memory_space<vmem>>, vector<1x2x8xf32>
    %190 = vector.shape_cast %189 : vector<1x2x8xf32> to vector<2x8xf32>
    %191 = vector.shape_cast %188 : vector<2x8xf32> to vector<1x2x8xf32>
    tpu.vector_store %arg12[%c3_134, %c4_135, %c0_136], %191 {strides = array<i32>} : memref<4x8x8xf32, #tpu.memory_space<vmem>>, vector<1x2x8xf32>,
    %192 = vector.extract_strided_slice %9 {offsets = [6, 24], sizes = [2, 8], strides = [1, 1]} : vector<8x32xf32> to vector<2x8xf32>
    %c3_137 = arith.constant 3 : index
    %c6_138 = arith.constant 6 : index
    %c0_139 = arith.constant 0 : index
    %193 = vector.load %arg10[%c3_137, %c6_138, %c0_139] : memref<4x8x8xf32, #tpu.memory_space<vmem>>, vector<1x2x8xf32>
    %194 = vector.shape_cast %193 : vector<1x2x8xf32> to vector<2x8xf32>
    %195 = vector.shape_cast %192 : vector<2x8xf32> to vector<1x2x8xf32>
    tpu.vector_store %arg10[%c3_137, %c6_138, %c0_139], %195 {strides = array<i32>} : memref<4x8x8xf32, #tpu.memory_space<vmem>>, vector<1x2x8xf32>,
    %196 = vector.extract_strided_slice %10 {offsets = [6, 24], sizes = [2, 8], strides = [1, 1]} : vector<8x32xf32> to vector<2x8xf32>
    %c3_140 = arith.constant 3 : index
    %c6_141 = arith.constant 6 : index
    %c0_142 = arith.constant 0 : index
    %197 = vector.load %arg11[%c3_140, %c6_141, %c0_142] : memref<4x8x8xf32, #tpu.memory_space<vmem>>, vector<1x2x8xf32>
    %198 = vector.shape_cast %197 : vector<1x2x8xf32> to vector<2x8xf32>
    %199 = vector.shape_cast %196 : vector<2x8xf32> to vector<1x2x8xf32>
    tpu.vector_store %arg11[%c3_140, %c6_141, %c0_142], %199 {strides = array<i32>} : memref<4x8x8xf32, #tpu.memory_space<vmem>>, vector<1x2x8xf32>,
    %200 = vector.extract_strided_slice %11 {offsets = [6, 24], sizes = [2, 8], strides = [1, 1]} : vector<8x32xf32> to vector<2x8xf32>
    %c3_143 = arith.constant 3 : index
    %c6_144 = arith.constant 6 : index
    %c0_145 = arith.constant 0 : index
    %201 = vector.load %arg12[%c3_143, %c6_144, %c0_145] : memref<4x8x8xf32, #tpu.memory_space<vmem>>, vector<1x2x8xf32>
    %202 = vector.shape_cast %201 : vector<1x2x8xf32> to vector<2x8xf32>
    %203 = vector.shape_cast %200 : vector<2x8xf32> to vector<1x2x8xf32>
    tpu.vector_store %arg12[%c3_143, %c6_144, %c0_145], %203 {strides = array<i32>} : memref<4x8x8xf32, #tpu.memory_space<vmem>>, vector<1x2x8xf32>,
    %c0_146 = arith.constant 0 : index
    %c0_147 = arith.constant 0 : index
    %c0_148 = arith.constant 0 : index
    %204 = vector.load %arg10[%c0_146, %c0_147, %c0_148] : memref<4x8x8xf32, #tpu.memory_space<vmem>>, vector<4x8x8xf32>
    %c0_149 = arith.constant 0 : index
    %c0_150 = arith.constant 0 : index
    %c0_151 = arith.constant 0 : index
    %205 = vector.load %arg11[%c0_149, %c0_150, %c0_151] : memref<4x8x8xf32, #tpu.memory_space<vmem>>, vector<4x8x8xf32>
    %c0_152 = arith.constant 0 : index
    %c0_153 = arith.constant 0 : index
    %c0_154 = arith.constant 0 : index
    %206 = vector.load %arg12[%c0_152, %c0_153, %c0_154] : memref<4x8x8xf32, #tpu.memory_space<vmem>>, vector<4x8x8xf32>
    "tpu.trace_start"() <{level = 10 : i32, message = "hqd,hkd->hqk"}> : () -> ()
    %cst_155 = arith.constant dense<0.000000e+00> : vector<4x8x8xf32>
    %207 = tpu.matmul %204, %205, %cst_155 {dimension_numbers = #tpu.dot_dimension_numbers<[2], [2], [1], [1], [0, 0, 0, 1, 1, 1], [0], [0]>} : vector<4x8x8xf32>, vector<4x8x8xf32>, vector<4x8x8xf32> -> vector<4x8x8xf32>
    "tpu.trace_stop"() : () -> ()
    %cst_156 = arith.constant dense<0xFF800000> : vector<4x8xf32>
    %208 = vector.multi_reduction <maximumf>, %207, %cst_156 [2] : vector<4x8x8xf32> to vector<4x8xf32>
    %209 = vector.shape_cast %208 : vector<4x8xf32> to vector<4x8x1xf32>
    %210 = vector.broadcast %209 : vector<4x8x1xf32> to vector<4x8x8xf32>
    %211 = arith.subf %207, %210 : vector<4x8x8xf32>
    %212 = math.exp %211 : vector<4x8x8xf32>
    %cst_157 = arith.constant dense<0.000000e+00> : vector<4x8xf32>
    %213 = vector.multi_reduction <add>, %212, %cst_157 [2] : vector<4x8x8xf32> to vector<4x8xf32>
    %214 = vector.shape_cast %213 : vector<4x8xf32> to vector<4x8x1xf32>
    %215 = tpu.reciprocal %214 : vector<4x8x1xf32> -> vector<4x8x1xf32>
    %216 = vector.broadcast %215 : vector<4x8x1xf32> to vector<4x8x8xf32>
    %217 = arith.mulf %212, %216 : vector<4x8x8xf32>
    %c0_158 = arith.constant 0 : index
    %c0_159 = arith.constant 0 : index
    %c0_160 = arith.constant 0 : index
    %c0_161 = arith.constant 0 : index
    %218 = vector.load %arg9[%c0_158, %c0_159, %c0_160, %c0_161] : memref<1x4x8x8xf32, #tpu.memory_space<vmem>>, vector<1x4x8x8xf32>
    %219 = vector.shape_cast %218 : vector<1x4x8x8xf32> to vector<4x8x8xf32>
    %220 = vector.shape_cast %217 : vector<4x8x8xf32> to vector<1x4x8x8xf32>
    tpu.vector_store %arg9[%c0_158, %c0_159, %c0_160, %c0_161], %220 {strides = array<i32>} : memref<1x4x8x8xf32, #tpu.memory_space<vmem>>, vector<1x4x8x8xf32>,
    "tpu.trace_start"() <{level = 10 : i32, message = "hqk,hkd->hqd"}> : () -> ()
    %cst_162 = arith.constant dense<0.000000e+00> : vector<4x8x8xf32>
    %221 = tpu.matmul %217, %206, %cst_162 {dimension_numbers = #tpu.dot_dimension_numbers<[2], [1], [1], [2], [0, 0, 0, 1, 1, 2], [0], [0]>} : vector<4x8x8xf32>, vector<4x8x8xf32>, vector<4x8x8xf32> -> vector<4x8x8xf32>
    "tpu.trace_stop"() : () -> ()
    %222 = vector.extract_strided_slice %221 {offsets = [0, 0, 0], sizes = [1, 2, 8], strides = [1, 1, 1]} : vector<4x8x8xf32> to vector<1x2x8xf32>
    %223 = vector.shape_cast %222 : vector<1x2x8xf32> to vector<2x8xf32>
    %c0_163 = arith.constant 0 : index
    %c0_164 = arith.constant 0 : index
    %224 = vector.load %arg13[%c0_163, %c0_164] : memref<8x32xf32, #tpu.memory_space<vmem>>, vector<2x8xf32>
    tpu.vector_store %arg13[%c0_163, %c0_164], %223 {strides = array<i32>} : memref<8x32xf32, #tpu.memory_space<vmem>>, vector<2x8xf32>,
    %225 = vector.extract_strided_slice %221 {offsets = [0, 2, 0], sizes = [1, 2, 8], strides = [1, 1, 1]} : vector<4x8x8xf32> to vector<1x2x8xf32>
    %226 = vector.shape_cast %225 : vector<1x2x8xf32> to vector<2x8xf32>
    %c0_165 = arith.constant 0 : index
    %c8 = arith.constant 8 : index
    %227 = vector.load %arg13[%c0_165, %c8] : memref<8x32xf32, #tpu.memory_space<vmem>>, vector<2x8xf32>
    tpu.vector_store %arg13[%c0_165, %c8], %226 {strides = array<i32>} : memref<8x32xf32, #tpu.memory_space<vmem>>, vector<2x8xf32>,
    %228 = vector.extract_strided_slice %221 {offsets = [0, 4, 0], sizes = [1, 2, 8], strides = [1, 1, 1]} : vector<4x8x8xf32> to vector<1x2x8xf32>
    %229 = vector.shape_cast %228 : vector<1x2x8xf32> to vector<2x8xf32>
    %c0_166 = arith.constant 0 : index
    %c16 = arith.constant 16 : index
    %230 = vector.load %arg13[%c0_166, %c16] : memref<8x32xf32, #tpu.memory_space<vmem>>, vector<2x8xf32>
    tpu.vector_store %arg13[%c0_166, %c16], %229 {strides = array<i32>} : memref<8x32xf32, #tpu.memory_space<vmem>>, vector<2x8xf32>,
    %231 = vector.extract_strided_slice %221 {offsets = [0, 6, 0], sizes = [1, 2, 8], strides = [1, 1, 1]} : vector<4x8x8xf32> to vector<1x2x8xf32>
    %232 = vector.shape_cast %231 : vector<1x2x8xf32> to vector<2x8xf32>
    %c0_167 = arith.constant 0 : index
    %c24 = arith.constant 24 : index
    %233 = vector.load %arg13[%c0_167, %c24] : memref<8x32xf32, #tpu.memory_space<vmem>>, vector<2x8xf32>
    tpu.vector_store %arg13[%c0_167, %c24], %232 {strides = array<i32>} : memref<8x32xf32, #tpu.memory_space<vmem>>, vector<2x8xf32>,
    %234 = vector.extract_strided_slice %221 {offsets = [1, 0, 0], sizes = [1, 2, 8], strides = [1, 1, 1]} : vector<4x8x8xf32> to vector<1x2x8xf32>
    %235 = vector.shape_cast %234 : vector<1x2x8xf32> to vector<2x8xf32>
    %c2_168 = arith.constant 2 : index
    %c0_169 = arith.constant 0 : index
    %236 = vector.load %arg13[%c2_168, %c0_169] : memref<8x32xf32, #tpu.memory_space<vmem>>, vector<2x8xf32>
    tpu.vector_store %arg13[%c2_168, %c0_169], %235 {strides = array<i32>} : memref<8x32xf32, #tpu.memory_space<vmem>>, vector<2x8xf32>,
    %237 = vector.extract_strided_slice %221 {offsets = [1, 2, 0], sizes = [1, 2, 8], strides = [1, 1, 1]} : vector<4x8x8xf32> to vector<1x2x8xf32>
    %238 = vector.shape_cast %237 : vector<1x2x8xf32> to vector<2x8xf32>
    %c2_170 = arith.constant 2 : index
    %c8_171 = arith.constant 8 : index
    %239 = vector.load %arg13[%c2_170, %c8_171] : memref<8x32xf32, #tpu.memory_space<vmem>>, vector<2x8xf32>
    tpu.vector_store %arg13[%c2_170, %c8_171], %238 {strides = array<i32>} : memref<8x32xf32, #tpu.memory_space<vmem>>, vector<2x8xf32>,
    %240 = vector.extract_strided_slice %221 {offsets = [1, 4, 0], sizes = [1, 2, 8], strides = [1, 1, 1]} : vector<4x8x8xf32> to vector<1x2x8xf32>
    %241 = vector.shape_cast %240 : vector<1x2x8xf32> to vector<2x8xf32>
    %c2_172 = arith.constant 2 : index
    %c16_173 = arith.constant 16 : index
    %242 = vector.load %arg13[%c2_172, %c16_173] : memref<8x32xf32, #tpu.memory_space<vmem>>, vector<2x8xf32>
    tpu.vector_store %arg13[%c2_172, %c16_173], %241 {strides = array<i32>} : memref<8x32xf32, #tpu.memory_space<vmem>>, vector<2x8xf32>,
    %243 = vector.extract_strided_slice %221 {offsets = [1, 6, 0], sizes = [1, 2, 8], strides = [1, 1, 1]} : vector<4x8x8xf32> to vector<1x2x8xf32>
    %244 = vector.shape_cast %243 : vector<1x2x8xf32> to vector<2x8xf32>
    %c2_174 = arith.constant 2 : index
    %c24_175 = arith.constant 24 : index
    %245 = vector.load %arg13[%c2_174, %c24_175] : memref<8x32xf32, #tpu.memory_space<vmem>>, vector<2x8xf32>
    tpu.vector_store %arg13[%c2_174, %c24_175], %244 {strides = array<i32>} : memref<8x32xf32, #tpu.memory_space<vmem>>, vector<2x8xf32>,
    %246 = vector.extract_strided_slice %221 {offsets = [2, 0, 0], sizes = [1, 2, 8], strides = [1, 1, 1]} : vector<4x8x8xf32> to vector<1x2x8xf32>
    %247 = vector.shape_cast %246 : vector<1x2x8xf32> to vector<2x8xf32>
    %c4_176 = arith.constant 4 : index
    %c0_177 = arith.constant 0 : index
    %248 = vector.load %arg13[%c4_176, %c0_177] : memref<8x32xf32, #tpu.memory_space<vmem>>, vector<2x8xf32>
    tpu.vector_store %arg13[%c4_176, %c0_177], %247 {strides = array<i32>} : memref<8x32xf32, #tpu.memory_space<vmem>>, vector<2x8xf32>,
    %249 = vector.extract_strided_slice %221 {offsets = [2, 2, 0], sizes = [1, 2, 8], strides = [1, 1, 1]} : vector<4x8x8xf32> to vector<1x2x8xf32>
    %250 = vector.shape_cast %249 : vector<1x2x8xf32> to vector<2x8xf32>
    %c4_178 = arith.constant 4 : index
    %c8_179 = arith.constant 8 : index
    %251 = vector.load %arg13[%c4_178, %c8_179] : memref<8x32xf32, #tpu.memory_space<vmem>>, vector<2x8xf32>
    tpu.vector_store %arg13[%c4_178, %c8_179], %250 {strides = array<i32>} : memref<8x32xf32, #tpu.memory_space<vmem>>, vector<2x8xf32>,
    %252 = vector.extract_strided_slice %221 {offsets = [2, 4, 0], sizes = [1, 2, 8], strides = [1, 1, 1]} : vector<4x8x8xf32> to vector<1x2x8xf32>
    %253 = vector.shape_cast %252 : vector<1x2x8xf32> to vector<2x8xf32>
    %c4_180 = arith.constant 4 : index
    %c16_181 = arith.constant 16 : index
    %254 = vector.load %arg13[%c4_180, %c16_181] : memref<8x32xf32, #tpu.memory_space<vmem>>, vector<2x8xf32>
    tpu.vector_store %arg13[%c4_180, %c16_181], %253 {strides = array<i32>} : memref<8x32xf32, #tpu.memory_space<vmem>>, vector<2x8xf32>,
    %255 = vector.extract_strided_slice %221 {offsets = [2, 6, 0], sizes = [1, 2, 8], strides = [1, 1, 1]} : vector<4x8x8xf32> to vector<1x2x8xf32>
    %256 = vector.shape_cast %255 : vector<1x2x8xf32> to vector<2x8xf32>
    %c4_182 = arith.constant 4 : index
    %c24_183 = arith.constant 24 : index
    %257 = vector.load %arg13[%c4_182, %c24_183] : memref<8x32xf32, #tpu.memory_space<vmem>>, vector<2x8xf32>
    tpu.vector_store %arg13[%c4_182, %c24_183], %256 {strides = array<i32>} : memref<8x32xf32, #tpu.memory_space<vmem>>, vector<2x8xf32>,
    %258 = vector.extract_strided_slice %221 {offsets = [3, 0, 0], sizes = [1, 2, 8], strides = [1, 1, 1]} : vector<4x8x8xf32> to vector<1x2x8xf32>
    %259 = vector.shape_cast %258 : vector<1x2x8xf32> to vector<2x8xf32>
    %c6_184 = arith.constant 6 : index
    %c0_185 = arith.constant 0 : index
    %260 = vector.load %arg13[%c6_184, %c0_185] : memref<8x32xf32, #tpu.memory_space<vmem>>, vector<2x8xf32>
    tpu.vector_store %arg13[%c6_184, %c0_185], %259 {strides = array<i32>} : memref<8x32xf32, #tpu.memory_space<vmem>>, vector<2x8xf32>,
    %261 = vector.extract_strided_slice %221 {offsets = [3, 2, 0], sizes = [1, 2, 8], strides = [1, 1, 1]} : vector<4x8x8xf32> to vector<1x2x8xf32>
    %262 = vector.shape_cast %261 : vector<1x2x8xf32> to vector<2x8xf32>
    %c6_186 = arith.constant 6 : index
    %c8_187 = arith.constant 8 : index
    %263 = vector.load %arg13[%c6_186, %c8_187] : memref<8x32xf32, #tpu.memory_space<vmem>>, vector<2x8xf32>
    tpu.vector_store %arg13[%c6_186, %c8_187], %262 {strides = array<i32>} : memref<8x32xf32, #tpu.memory_space<vmem>>, vector<2x8xf32>,
    %264 = vector.extract_strided_slice %221 {offsets = [3, 4, 0], sizes = [1, 2, 8], strides = [1, 1, 1]} : vector<4x8x8xf32> to vector<1x2x8xf32>
    %265 = vector.shape_cast %264 : vector<1x2x8xf32> to vector<2x8xf32>
    %c6_188 = arith.constant 6 : index
    %c16_189 = arith.constant 16 : index
    %266 = vector.load %arg13[%c6_188, %c16_189] : memref<8x32xf32, #tpu.memory_space<vmem>>, vector<2x8xf32>
    tpu.vector_store %arg13[%c6_188, %c16_189], %265 {strides = array<i32>} : memref<8x32xf32, #tpu.memory_space<vmem>>, vector<2x8xf32>,
    %267 = vector.extract_strided_slice %221 {offsets = [3, 6, 0], sizes = [1, 2, 8], strides = [1, 1, 1]} : vector<4x8x8xf32> to vector<1x2x8xf32>
    %268 = vector.shape_cast %267 : vector<1x2x8xf32> to vector<2x8xf32>
    %c6_190 = arith.constant 6 : index
    %c24_191 = arith.constant 24 : index
    %269 = vector.load %arg13[%c6_190, %c24_191] : memref<8x32xf32, #tpu.memory_space<vmem>>, vector<2x8xf32>
    tpu.vector_store %arg13[%c6_190, %c24_191], %268 {strides = array<i32>} : memref<8x32xf32, #tpu.memory_space<vmem>>, vector<2x8xf32>,
    %c0_192 = arith.constant 0 : index
    %c0_193 = arith.constant 0 : index
    %270 = vector.load %arg13[%c0_192, %c0_193] : memref<8x32xf32, #tpu.memory_space<vmem>>, vector<8x32xf32>
    %c0_194 = arith.constant 0 : index
    %c0_195 = arith.constant 0 : index
    %271 = vector.load %arg4[%c0_194, %c0_195] : memref<32x32xf32, #tpu.memory_space<vmem>>, vector<32x32xf32>
    %cst_196 = arith.constant dense<0.000000e+00> : vector<8x32xf32>
    %272 = tpu.matmul %270, %271, %cst_196 {dimension_numbers = #tpu.dot_dimension_numbers<[1], [0], [0], [1], [0, 0, 1, 1], [], []>} : vector<8x32xf32>, vector<32x32xf32>, vector<8x32xf32> -> vector<8x32xf32>
    %c0_197 = arith.constant 0 : index
    %c0_198 = arith.constant 0 : index
    %273 = vector.load %arg5[%c0_197, %c0_198] : memref<1x32xf32, #tpu.memory_space<vmem>>, vector<1x32xf32>
    %274 = vector.broadcast %273 : vector<1x32xf32> to vector<8x32xf32>
    %275 = arith.addf %272, %274 : vector<8x32xf32>
    %276 = arith.addf %1, %275 : vector<8x32xf32>
    %cst_199 = arith.constant dense<0.000000e+00> : vector<8xf32>
    %277 = vector.multi_reduction <add>, %276, %cst_199 [1] : vector<8x32xf32> to vector<8xf32>
    %278 = vector.shape_cast %277 : vector<8xf32> to vector<8x1xf32>
    %cst_200 = arith.constant 3.200000e+01 : f32
    %279 = vector.broadcast %cst_200 : f32 to vector<8x1xf32>
    %280 = arith.divf %278, %279 : vector<8x1xf32>
    %281 = vector.broadcast %280 : vector<8x1xf32> to vector<8x32xf32>
    %282 = arith.subf %276, %281 : vector<8x32xf32>
    %283 = arith.mulf %282, %282 : vector<8x32xf32>
    %cst_201 = arith.constant dense<0.000000e+00> : vector<8xf32>
    %284 = vector.multi_reduction <add>, %283, %cst_201 [1] : vector<8x32xf32> to vector<8xf32>
    %285 = vector.shape_cast %284 : vector<8xf32> to vector<8x1xf32>
    %cst_202 = arith.constant 3.200000e+01 : f32
    %286 = vector.broadcast %cst_202 : f32 to vector<8x1xf32>
    %287 = arith.divf %285, %286 : vector<8x1xf32>
    %288 = vector.broadcast %280 : vector<8x1xf32> to vector<8x32xf32>
    %289 = arith.subf %276, %288 : vector<8x32xf32>
    %cst_203 = arith.constant 9.99999974E-6 : f32
    %290 = vector.broadcast %cst_203 : f32 to vector<8x1xf32>
    %291 = arith.addf %287, %290 : vector<8x1xf32>
    %292 = math.rsqrt %291 : vector<8x1xf32>
    %293 = vector.broadcast %292 : vector<8x1xf32> to vector<8x32xf32>
    %294 = arith.mulf %289, %293 : vector<8x32xf32>
    %c0_204 = arith.constant 0 : index
    %c0_205 = arith.constant 0 : index
    %295 = vector.load %arg6[%c0_204, %c0_205] : memref<1x32xf32, #tpu.memory_space<vmem>>, vector<1x32xf32>
    %296 = vector.broadcast %295 : vector<1x32xf32> to vector<8x32xf32>
    %297 = arith.mulf %294, %296 : vector<8x32xf32>
    %c0_206 = arith.constant 0 : index
    %c0_207 = arith.constant 0 : index
    %298 = vector.load %arg7[%c0_206, %c0_207] : memref<1x32xf32, #tpu.memory_space<vmem>>, vector<1x32xf32>
    %299 = vector.broadcast %298 : vector<1x32xf32> to vector<8x32xf32>
    %300 = arith.addf %297, %299 : vector<8x32xf32>
    %c0_208 = arith.constant 0 : index
    %c0_209 = arith.constant 0 : index
    %c0_210 = arith.constant 0 : index
    %301 = vector.load %arg8[%c0_208, %c0_209, %c0_210] : memref<1x8x32xf32, #tpu.memory_space<vmem>>, vector<1x8x32xf32>
    %302 = vector.shape_cast %301 : vector<1x8x32xf32> to vector<8x32xf32>
    %303 = vector.shape_cast %300 : vector<8x32xf32> to vector<1x8x32xf32>
    tpu.vector_store %arg8[%c0_208, %c0_209, %c0_210], %303 {strides = array<i32>} : memref<1x8x32xf32, #tpu.memory_space<vmem>>, vector<1x8x32xf32>,
    return
  }
  func.func @transform_0(%arg0: i32) -> (i32, i32, i32) {
    %c0_i32 = arith.constant 0 : i32
    %c0_i32_0 = arith.constant 0 : i32
    %c0_i32_1 = arith.constant 0 : i32
    return %arg0, %c0_i32, %c0_i32_0 : i32, i32, i32
  }
  func.func @transform_1(%arg0: i32) -> (i32, i32) {
    %c0_i32 = arith.constant 0 : i32
    %c0_i32_0 = arith.constant 0 : i32
    %c0_i32_1 = arith.constant 0 : i32
    return %c0_i32, %c0_i32_0 : i32, i32
  }
  func.func @transform_2(%arg0: i32) -> (i32, i32) {
    %c0_i32 = arith.constant 0 : i32
    %c0_i32_0 = arith.constant 0 : i32
    %c0_i32_1 = arith.constant 0 : i32
    return %c0_i32, %c0_i32_0 : i32, i32
  }
  func.func @transform_3(%arg0: i32) -> (i32, i32) {
    %c0_i32 = arith.constant 0 : i32
    %c0_i32_0 = arith.constant 0 : i32
    %c0_i32_1 = arith.constant 0 : i32
    return %c0_i32, %c0_i32_0 : i32, i32
  }
  func.func @transform_4(%arg0: i32) -> (i32, i32) {
    %c0_i32 = arith.constant 0 : i32
    %c0_i32_0 = arith.constant 0 : i32
    %c0_i32_1 = arith.constant 0 : i32
    return %c0_i32, %c0_i32_0 : i32, i32
  }
  func.func @transform_5(%arg0: i32) -> (i32, i32) {
    %c0_i32 = arith.constant 0 : i32
    %c0_i32_0 = arith.constant 0 : i32
    %c0_i32_1 = arith.constant 0 : i32
    return %c0_i32, %c0_i32_0 : i32, i32
  }
  func.func @transform_6(%arg0: i32) -> (i32, i32) {
    %c0_i32 = arith.constant 0 : i32
    %c0_i32_0 = arith.constant 0 : i32
    %c0_i32_1 = arith.constant 0 : i32
    return %c0_i32, %c0_i32_0 : i32, i32
  }
  func.func @transform_7(%arg0: i32) -> (i32, i32, i32) {
    %c0_i32 = arith.constant 0 : i32
    %c0_i32_0 = arith.constant 0 : i32
    %c0_i32_1 = arith.constant 0 : i32
    return %arg0, %c0_i32, %c0_i32_0 : i32, i32, i32
  }
  func.func @transform_8(%arg0: i32) -> (i32, i32, i32, i32) {
    %c0_i32 = arith.constant 0 : i32
    %c0_i32_0 = arith.constant 0 : i32
    %c0_i32_1 = arith.constant 0 : i32
    %c0_i32_2 = arith.constant 0 : i32
    return %arg0, %c0_i32, %c0_i32_0, %c0_i32_1 : i32, i32, i32, i32
  }
}

</mosaic_0001>

<llo_original>
// kernel: tpu_custom_call.1
$region0: #{tpu_custom_call.1}
  #allocation0 [shape = 'u32[]', space=smem, size = 0x4, offset = 0x4, fixed_abs, tag = 'smem constant byte address 0x4 - core index']
  #allocation1 [shape = 'u32[72,128]{1,0:T(1,128)}', space=vmem, size = 0x9000, scoped, tag = 'internal scratch']
  #allocation2 [shape = 'f32[4,8,8]{2,1,0:T(8,128)}', space=vmem, size = 0x4000, scoped, tag = 'scratch operand']
  #allocation3 [shape = 'f32[4,8,8]{2,1,0:T(8,128)}', space=vmem, size = 0x4000, scoped, tag = 'scratch operand']
  #allocation4 [shape = 'f32[4,8,8]{2,1,0:T(8,128)}', space=vmem, size = 0x4000, scoped, tag = 'scratch operand']
  #allocation5 [shape = 'f32[8,32]{1,0:T(8,128)}', space=vmem, size = 0x1000, scoped, tag = 'scratch operand']
  %s0 = inlined_call_operand.hbm [shape: f32[2,8,32], index: 0, kind: input, shape index: {}]
  %s1 = inlined_call_operand.hbm [shape: f32[32,96], index: 1, kind: input, shape index: {}]
  %s2 = inlined_call_operand.vmem [shape: f32[1,96], index: 2, kind: input, shape index: {}]
  %s3 = inlined_call_operand.hbm [shape: f32[32,32], index: 3, kind: input, shape index: {}]
  %s4 = inlined_call_operand.vmem [shape: f32[1,32], index: 4, kind: input, shape index: {}]
  %s5 = inlined_call_operand.vmem [shape: f32[1,32], index: 5, kind: input, shape index: {}]
  %s6 = inlined_call_operand.vmem [shape: f32[1,32], index: 6, kind: input, shape index: {}]
  %s7 = inlined_call_operand.hbm [shape: f32[2,8,32], index: 7, kind: output, shape index: {0}]
  %s8 = inlined_call_operand.hbm [shape: f32[2,4,8,8], index: 8, kind: output, shape index: {1}]
  %9 = xla_tuple %s7, %s8
  %s10 = sld [smem:[#allocation0]]
  $region81: #{tpu_custom_call.1} parent=0
    _
  %s12 = ssub.s32 1, %s10
  %s13 = scalar_select 0, %s12, %s10
  $region1: #{tpu_custom_call.1} parent=0
    #allocation6 [shape = 'u8[8192]{0}', space=vmem, size = 0x2000, scoped, tag = 'input window, operand 0']
    #allocation7 [shape = 's32[2]{0}', space=sflag, size = 0x8, scoped, tag = 'scoped memory for tpu_custom_call.1']
    #allocation8 [shape = 's32[2]{0}', space=sflag, size = 0x8, scoped, tag = 'scoped memory for tpu_custom_call.1']
    #allocation9 [shape = 'u8[16384]{0}', space=vmem, size = 0x4000, scoped, tag = 'input window, operand 1, single buffered']
    #allocation10 [shape = 's32[1]{0}', space=sflag, size = 0x4, scoped, tag = 'scoped memory for tpu_custom_call.1']
    #allocation11 [shape = 'u8[16384]{0}', space=vmem, size = 0x4000, scoped, tag = 'input window, operand 3, single buffered']
    #allocation12 [shape = 'u8[8192]{0}', space=vmem, size = 0x2000, scoped, tag = 'output window, operand 0']
    #allocation13 [shape = 'u8[32768]{0}', space=vmem, size = 0x8000, scoped, tag = 'output window, operand 1']
    #allocation14 [shape = 's32[2]{0}', space=sflag, size = 0x8, scoped, tag = 'scoped memory for tpu_custom_call.1']
    %14 = vsyncpa [#allocation7], 0
    %s15 = scalar_lea.sflag [#allocation7], 1
    %16 = vsyncpa %s15, 0
    %17 = vsyncpa [#allocation10], 0
    %18 = vsyncpa [#allocation8], 0
    %s19 = scalar_lea.sflag [#allocation8], 1
    %20 = vsyncpa %s19, 0
    %21 = vsyncpa [#allocation14], 0
    %s22 = scalar_lea.sflag [#allocation14], 1
    %23 = vsyncpa %s22, 0
    loop: start=0, step=1, limit=4
    $region2: #{tpu_custom_call.1} parent=1 // loop_pre_header
      _
    $region3: #{tpu_custom_call.1} parent=1 // loop_header
      %s25 = sphi 0, %s29
      %p26 = scmp.ge.s32.totalorder %s25, 4
      %s35 = sphi 0, %s37
      %s38 = sphi 0, %s35
      %s39 = sphi 0, %s38
      %s55 = sphi 0, %s39
      %s59 = sphi 0, %s59
      %s61 = sphi 0, %s59
      %s62 = sphi 0, %s61
      %s76 = sphi 0, %s62
      %s80 = sphi 0, %s80
      %s82 = sphi 0, %s80
      %s83 = sphi 0, %s82
      %s97 = sphi 0, %s83
      %s101 = sphi 0, %s101
      %s103 = sphi 0, %s101
      %s104 = sphi 0, %s103
      %s118 = sphi 0, %s104
      %s122 = sphi 0, %s122
      %s124 = sphi 0, %s122
      %s125 = sphi 0, %s124
      %s139 = sphi 0, %s125
      %s143 = sphi 0, %s143
      %s145 = sphi 0, %s143
      %s146 = sphi 0, %s145
      %s160 = sphi 0, %s146
      %s164 = sphi 0, %s164
      %s166 = sphi 0, %s164
      %s167 = sphi 0, %s166
      %s181 = sphi 0, %s167
      %s187 = sphi 0, %s189
      %s190 = sphi 0, %s187
      %s191 = sphi 0, %s190
      %s207 = sphi 0, %s191
      %s213 = sphi 0, %s215
      %s216 = sphi 0, %s213
      %s217 = sphi 0, %s216
      %s233 = sphi 0, %s217
    $region4: #{tpu_custom_call.1} parent=1 // loop_header_branch
      %28 = sbr.rel (%p26) target = $region8
    $region5: #{tpu_custom_call.1} parent=1 // loop_body
      %s30 = ssub.s32 %s25, 1
      %s31 = ssub.s32 %s25, 2
      %s32 = sadd.s32 %s25, 1
      %s33 = ssub.s32 %s25, %s32
      %p34 = scmp.eq.s32.totalorder %s33, 0
      %s36 = sadd.s32 %s35, 1
      %s37 = scalar_select %p34, %s35, %s36
      %p40 = pneg %p34
      %p41 = scmp.eq.s32.totalorder %s25, 1
      %p42 = por %p40, %p41
      %p43 = scmp.ne.s32.totalorder %s35, %s38
      %p44 = scmp.eq.s32.totalorder %s25, 0
      %p45 = por %p43, %p44
      %p46 = scmp.ne.s32.totalorder %s35, %s38
      %p47 = scmp.eq.s32.totalorder %s30, 1
      %p48 = por %p46, %p47
      %p49 = scmp.ne.s32.totalorder %s38, %s39
      %p50 = scmp.eq.s32.totalorder %s30, 0
      %p51 = por %p49, %p50
      %p52 = scmp.ne.s32.totalorder %s38, %s39
      %p53 = scmp.eq.s32.totalorder %s31, 1
      %p54 = por %p52, %p53
      %p56 = scmp.ne.s32.totalorder %s39, %s55
      %p57 = scmp.eq.s32.totalorder %s31, 0
      %p58 = por %p56, %p57
      %s60 = sadd.s32 %s59, 1
      %p63 = scmp.eq.s32.totalorder %s25, 1
      %p64 = scmp.ne.s32.totalorder %s59, %s61
      %p65 = scmp.eq.s32.totalorder %s25, 0
      %p66 = por %p64, %p65
      %p67 = scmp.ne.s32.totalorder %s59, %s61
      %p68 = scmp.eq.s32.totalorder %s30, 1
      %p69 = por %p67, %p68
      %p70 = scmp.ne.s32.totalorder %s61, %s62
      %p71 = scmp.eq.s32.totalorder %s30, 0
      %p72 = por %p70, %p71
      %p73 = scmp.ne.s32.totalorder %s61, %s62
      %p74 = scmp.eq.s32.totalorder %s31, 1
      %p75 = por %p73, %p74
      %p77 = scmp.ne.s32.totalorder %s62, %s76
      %p78 = scmp.eq.s32.totalorder %s31, 0
      %p79 = por %p77, %p78
      %s81 = sadd.s32 %s80, 1
      %p84 = scmp.eq.s32.totalorder %s25, 1
      %p85 = scmp.ne.s32.totalorder %s80, %s82
      %p86 = scmp.eq.s32.totalorder %s25, 0
      %p87 = por %p85, %p86
      %p88 = scmp.ne.s32.totalorder %s80, %s82
      %p89 = scmp.eq.s32.totalorder %s30, 1
      %p90 = por %p88, %p89
      %p91 = scmp.ne.s32.totalorder %s82, %s83
      %p92 = scmp.eq.s32.totalorder %s30, 0
      %p93 = por %p91, %p92
      %p94 = scmp.ne.s32.totalorder %s82, %s83
      %p95 = scmp.eq.s32.totalorder %s31, 1
      %p96 = por %p94, %p95
      %p98 = scmp.ne.s32.totalorder %s83, %s97
      %p99 = scmp.eq.s32.totalorder %s31, 0
      %p100 = por %p98, %p99
      %s102 = sadd.s32 %s101, 1
      %p105 = scmp.eq.s32.totalorder %s25, 1
      %p106 = scmp.ne.s32.totalorder %s101, %s103
      %p107 = scmp.eq.s32.totalorder %s25, 0
      %p108 = por %p106, %p107
      %p109 = scmp.ne.s32.totalorder %s101, %s103
      %p110 = scmp.eq.s32.totalorder %s30, 1
      %p111 = por %p109, %p110
      %p112 = scmp.ne.s32.totalorder %s103, %s104
      %p113 = scmp.eq.s32.totalorder %s30, 0
      %p114 = por %p112, %p113
      %p115 = scmp.ne.s32.totalorder %s103, %s104
      %p116 = scmp.eq.s32.totalorder %s31, 1
      %p117 = por %p115, %p116
      %p119 = scmp.ne.s32.totalorder %s104, %s118
      %p120 = scmp.eq.s32.totalorder %s31, 0
      %p121 = por %p119, %p120
      %s123 = sadd.s32 %s122, 1
      %p126 = scmp.eq.s32.totalorder %s25, 1
      %p127 = scmp.ne.s32.totalorder %s122, %s124
      %p128 = scmp.eq.s32.totalorder %s25, 0
      %p129 = por %p127, %p128
      %p130 = scmp.ne.s32.totalorder %s122, %s124
      %p131 = scmp.eq.s32.totalorder %s30, 1
      %p132 = por %p130, %p131
      %p133 = scmp.ne.s32.totalorder %s124, %s125
      %p134 = scmp.eq.s32.totalorder %s30, 0
      %p135 = por %p133, %p134
      %p136 = scmp.ne.s32.totalorder %s124, %s125
      %p137 = scmp.eq.s32.totalorder %s31, 1
      %p138 = por %p136, %p137
      %p140 = scmp.ne.s32.totalorder %s125, %s139
      %p141 = scmp.eq.s32.totalorder %s31, 0
      %p142 = por %p140, %p141
      %s144 = sadd.s32 %s143, 1
      %p147 = scmp.eq.s32.totalorder %s25, 1
      %p148 = scmp.ne.s32.totalorder %s143, %s145
      %p149 = scmp.eq.s32.totalorder %s25, 0
      %p150 = por %p148, %p149
      %p151 = scmp.ne.s32.totalorder %s143, %s145
      %p152 = scmp.eq.s32.totalorder %s30, 1
      %p153 = por %p151, %p152
      %p154 = scmp.ne.s32.totalorder %s145, %s146
      %p155 = scmp.eq.s32.totalorder %s30, 0
      %p156 = por %p154, %p155
      %p157 = scmp.ne.s32.totalorder %s145, %s146
      %p158 = scmp.eq.s32.totalorder %s31, 1
      %p159 = por %p157, %p158
      %p161 = scmp.ne.s32.totalorder %s146, %s160
      %p162 = scmp.eq.s32.totalorder %s31, 0
      %p163 = por %p161, %p162
      %s165 = sadd.s32 %s164, 1
      %p168 = scmp.eq.s32.totalorder %s25, 1
      %p169 = scmp.ne.s32.totalorder %s164, %s166
      %p170 = scmp.eq.s32.totalorder %s25, 0
      %p171 = por %p169, %p170
      %p172 = scmp.ne.s32.totalorder %s164, %s166
      %p173 = scmp.eq.s32.totalorder %s30, 1
      %p174 = por %p172, %p173
      %p175 = scmp.ne.s32.totalorder %s166, %s167
      %p176 = scmp.eq.s32.totalorder %s30, 0
      %p177 = por %p175, %p176
      %p178 = scmp.ne.s32.totalorder %s166, %s167
      %p179 = scmp.eq.s32.totalorder %s31, 1
      %p180 = por %p178, %p179
      %p182 = scmp.ne.s32.totalorder %s167, %s181
      %p183 = scmp.eq.s32.totalorder %s31, 0
      %p184 = por %p182, %p183
      %s185 = ssub.s32 %s25, %s32
      %p186 = scmp.eq.s32.totalorder %s185, 0
      %s188 = sadd.s32 %s187, 1
      %s189 = scalar_select %p186, %s187, %s188
      %p192 = pneg %p186
      %p193 = scmp.eq.s32.totalorder %s25, 1
      %p194 = por %p192, %p193
      %p195 = scmp.ne.s32.totalorder %s187, %s190
      %p196 = scmp.eq.s32.totalorder %s25, 0
      %p197 = por %p195, %p196
      %p198 = scmp.ne.s32.totalorder %s187, %s190
      %p199 = scmp.eq.s32.totalorder %s30, 1
      %p200 = por %p198, %p199
      %p201 = scmp.ne.s32.totalorder %s190, %s191
      %p202 = scmp.eq.s32.totalorder %s30, 0
      %p203 = por %p201, %p202
      %p204 = scmp.ne.s32.totalorder %s190, %s191
      %p205 = scmp.eq.s32.totalorder %s31, 1
      %p206 = por %p204, %p205
      %p208 = scmp.ne.s32.totalorder %s191, %s207
      %p209 = scmp.eq.s32.totalorder %s31, 0
      %p210 = por %p208, %p209
      %s211 = ssub.s32 %s25, %s32
      %p212 = scmp.eq.s32.totalorder %s211, 0
      %s214 = sadd.s32 %s213, 1
      %s215 = scalar_select %p212, %s213, %s214
      %p218 = pneg %p212
      %p219 = scmp.eq.s32.totalorder %s25, 1
      %p220 = por %p218, %p219
      %p221 = scmp.ne.s32.totalorder %s213, %s216
      %p222 = scmp.eq.s32.totalorder %s25, 0
      %p223 = por %p221, %p222
      %p224 = scmp.ne.s32.totalorder %s213, %s216
      %p225 = scmp.eq.s32.totalorder %s30, 1
      %p226 = por %p224, %p225
      %p227 = scmp.ne.s32.totalorder %s216, %s217
      %p228 = scmp.eq.s32.totalorder %s30, 0
      %p229 = por %p227, %p228
      %p230 = scmp.ne.s32.totalorder %s216, %s217
      %p231 = scmp.eq.s32.totalorder %s31, 1
      %p232 = por %p230, %p231
      %p234 = scmp.ne.s32.totalorder %s217, %s233
      %p235 = scmp.eq.s32.totalorder %s31, 0
      %p236 = por %p234, %p235
      %p237 = scmp.le.s32.totalorder 1, %s25
      %p238 = scmp.lt.s32.totalorder %s25, 3
      %p239 = pnand %p237, %p238
      %p240 = pneg %p239
      // Predicated region
      $region9: #{tpu_custom_call.1} parent=5 // pred_check
        _
      $region10: #{tpu_custom_call.1} parent=5 // pred_check_branch
        %242 = sbr.rel (%p239) target = $region12
      $region11: #{tpu_custom_call.1} parent=5 // pred_region
        %s243 = ssub.s32 %s25, 1
        // Predicated region
        $region13: #{tpu_custom_call.1} parent=11 // pred_check
          %p244 = pneg %p72
        $region14: #{tpu_custom_call.1} parent=11 // pred_check_branch
          %246 = sbr.rel (%p244) target = $region16
        $region15: #{tpu_custom_call.1} parent=11 // pred_region
          %248 = vsyncadd [#allocation10], 0
          %s249 = sshll.u32 %s1, 4
          %s250 = int_to_ptr.hbm [resolvable:$true] %s249
          %s251 = sshll.u32 [#allocation9], 4
          %s252 = int_to_ptr.vmem [resolvable:$true] %s251
          %257 = dma.hbm_to_vmem [thread:$0]  %s250, 512, %s252, [#allocation10], 128, 128, 8
        $region16: #{tpu_custom_call.1} parent=11 // pred_fallthru
          _
        // Predicated region
        $region17: #{tpu_custom_call.1} parent=11 // pred_check
          %p258 = pneg %p93
        $region18: #{tpu_custom_call.1} parent=11 // pred_check_branch
          %260 = sbr.rel (%p258) target = $region20
        $region19: #{tpu_custom_call.1} parent=11 // pred_region
          _
        $region20: #{tpu_custom_call.1} parent=11 // pred_fallthru
          _
        // Predicated region
        $region21: #{tpu_custom_call.1} parent=11 // pred_check
          %p261 = pneg %p114
        $region22: #{tpu_custom_call.1} parent=11 // pred_check_branch
          %263 = sbr.rel (%p261) target = $region24
        $region23: #{tpu_custom_call.1} parent=11 // pred_region
          %265 = vsyncadd [#allocation10], 0
          %s266 = sshll.u32 %s3, 4
          %s267 = int_to_ptr.hbm [resolvable:$true] %s266
          %s268 = sshll.u32 [#allocation11], 4
          %s269 = int_to_ptr.vmem [resolvable:$true] %s268
          %274 = dma.hbm_to_vmem [thread:$0]  %s267, 512, %s269, [#allocation10], 128, 128, 8
        $region24: #{tpu_custom_call.1} parent=11 // pred_fallthru
          _
        // Predicated region
        $region25: #{tpu_custom_call.1} parent=11 // pred_check
          %p275 = pneg %p135
        $region26: #{tpu_custom_call.1} parent=11 // pred_check_branch
          %277 = sbr.rel (%p275) target = $region28
        $region27: #{tpu_custom_call.1} parent=11 // pred_region
          _
        $region28: #{tpu_custom_call.1} parent=11 // pred_fallthru
          _
        // Predicated region
        $region29: #{tpu_custom_call.1} parent=11 // pred_check
          %p278 = pneg %p156
        $region30: #{tpu_custom_call.1} parent=11 // pred_check_branch
          %280 = sbr.rel (%p278) target = $region32
        $region31: #{tpu_custom_call.1} parent=11 // pred_region
          _
        $region32: #{tpu_custom_call.1} parent=11 // pred_fallthru
          _
        // Predicated region
        $region33: #{tpu_custom_call.1} parent=11 // pred_check
          %p281 = pneg %p177
        $region34: #{tpu_custom_call.1} parent=11 // pred_check_branch
          %283 = sbr.rel (%p281) target = $region36
        $region35: #{tpu_custom_call.1} parent=11 // pred_region
          _
        $region36: #{tpu_custom_call.1} parent=11 // pred_fallthru
          _
      $region12: #{tpu_custom_call.1} parent=5 // pred_fallthru
        _
      %p284 = scmp.lt.s32.totalorder %s25, 2
      // Predicated region
      $region37: #{tpu_custom_call.1} parent=5 // pred_check
        %p285 = pneg %p284
      $region38: #{tpu_custom_call.1} parent=5 // pred_check_branch
        %287 = sbr.rel (%p285) target = $region40
      $region39: #{tpu_custom_call.1} parent=5 // pred_region
        // Predicated region
        $region41: #{tpu_custom_call.1} parent=39 // pred_check
          %p288 = pneg %p45
        $region42: #{tpu_custom_call.1} parent=39 // pred_check_branch
          %290 = sbr.rel (%p288) target = $region44
        $region43: #{tpu_custom_call.1} parent=39 // pred_region
          %s291 = sand.u32 %s35, 1
          %s292 = scalar_lea.sflag [#allocation7], %s291
          %s293 = sand.u32 %s35, 1
          %s294 = smul.addr %s293, 8
          %s295 = scalar_lea.vmem [#allocation6], %s294
          %297 = vsyncadd %s292, 0
          %s298 = smul.addr %s25, 8
          %s299 = scalar_lea.hbm %s0, %s298
          %s301 = sshll.u32 %s299, 4
          %s302 = int_to_ptr.hbm [resolvable:$true] %s301
          %s303 = sshll.u32 %s295, 4
          %s304 = int_to_ptr.vmem [resolvable:$true] %s303
          %306 = dma.hbm_to_vmem [thread:$0]  %s302, 128, %s304, %s292
        $region44: #{tpu_custom_call.1} parent=39 // pred_fallthru
          _
      $region40: #{tpu_custom_call.1} parent=5 // pred_fallthru
        _
      %p307 = scmp.le.s32.totalorder 1, %s25
      %p308 = scmp.lt.s32.totalorder %s25, 3
      %p309 = pnand %p307, %p308
      %p310 = pneg %p309
      // Predicated region
      $region45: #{tpu_custom_call.1} parent=5 // pred_check
        _
      $region46: #{tpu_custom_call.1} parent=5 // pred_check_branch
        %312 = sbr.rel (%p309) target = $region48
      $region47: #{tpu_custom_call.1} parent=5 // pred_region
        %s313 = ssub.s32 %s25, 1
        %s314 = sand.u32 %s38, 1
        %s315 = scalar_lea.sflag [#allocation7], %s314
        %s316 = sand.u32 %s38, 1
        %s317 = smul.addr %s316, 8
        %s318 = scalar_lea.vmem [#allocation6], %s317
        // Predicated region
        $region49: #{tpu_custom_call.1} parent=47 // pred_check
          %p319 = pneg %p51
        $region50: #{tpu_custom_call.1} parent=47 // pred_check_branch
          %321 = sbr.rel (%p319) target = $region52
        $region51: #{tpu_custom_call.1} parent=47 // pred_region
          %323 = dma.done %s315, 128
        $region52: #{tpu_custom_call.1} parent=47 // pred_fallthru
          _
        // Predicated region
        $region53: #{tpu_custom_call.1} parent=47 // pred_check
          %p324 = pneg %p72
        $region54: #{tpu_custom_call.1} parent=47 // pred_check_branch
          %326 = sbr.rel (%p324) target = $region56
        $region55: #{tpu_custom_call.1} parent=47 // pred_region
          %328 = dma.done [#allocation10], 512
        $region56: #{tpu_custom_call.1} parent=47 // pred_fallthru
          _
        // Predicated region
        $region57: #{tpu_custom_call.1} parent=47 // pred_check
          %p329 = pneg %p114
        $region58: #{tpu_custom_call.1} parent=47 // pred_check_branch
          %331 = sbr.rel (%p329) target = $region60
        $region59: #{tpu_custom_call.1} parent=47 // pred_region
          %333 = dma.done [#allocation10], 512
        $region60: #{tpu_custom_call.1} parent=47 // pred_fallthru
          _
        %s334 = sand.u32 %s38, 1
        %s335 = scalar_lea.sflag [#allocation7], %s334
        %s336 = sand.u32 %s38, 1
        %s337 = smul.addr %s336, 8
        %s338 = scalar_lea.vmem [#allocation6], %s337
        %p339 = pneg %p51
        %p340 = pneg %p48
        %p341 = pneg %p72
        %p342 = pneg %p69
        %p343 = pneg %p93
        %p344 = pneg %p90
        %p345 = pneg %p114
        %p346 = pneg %p111
        %p347 = pneg %p135
        %p348 = pneg %p132
        %p349 = pneg %p156
        %p350 = pneg %p153
        %p351 = pneg %p177
        %p352 = pneg %p174
        %p353 = pneg %p203
        %p354 = pneg %p200
        %s355 = sand.u32 %s190, 1
        %s356 = scalar_lea.sflag [#allocation8], %s355
        %s357 = sand.u32 %s190, 1
        %s358 = smul.addr %s357, 8
        %s359 = scalar_lea.vmem [#allocation12], %s358
        %p360 = pneg %p229
        %p361 = pneg %p226
        %s362 = sand.u32 %s216, 1
        %s363 = scalar_lea.sflag [#allocation14], %s362
        %s364 = sand.u32 %s216, 1
        %s365 = smul.addr %s364, 32
        %s366 = scalar_lea.vmem [#allocation13], %s365
        %v367 = vld [vmem:[%s318] sm:$0xff]
        %v368 = vld [vmem:[#allocation9] sm:$0xff]
        %v369 = vld [vmem:[#allocation9 + $0x8] sm:$0xff]
        %v370 = vld [vmem:[#allocation9 + $0x10] sm:$0xff]
        %v371 = vld [vmem:[#allocation9 + $0x18] sm:$0xff]
        %v372 = vld [vmem:[%s2] sm:$0x1]
        %v374 = vperm.slane %v372, 0
        %vm376 = vcmask 261120
        %v378 = vsel %vm376, %v367, 0
        %380 = vmatpush.msra.mxu0 0.0
        %381 = vmatpush.msra.mxu0 0.0
        %382 = vmatpush.msra.mxu0 0.0
        %383 = vmatpush.msra.mxu0 0.0
        %384 = vmatpush.msra.mxu0 0.0
        %385 = vmatpush.msra.mxu0 0.0
        %386 = vmatpush.msra.mxu0 0.0
        %387 = vmatpush.msra.mxu0 0.0
        %388 = vmatpush.msra.mxu0 0.0
        %389 = vmatpush.msra.mxu0 0.0
        %390 = vmatpush.msra.mxu0 0.0
        %391 = vmatpush.msra.mxu0 0.0
        %392 = vmatpush.msra.mxu0 %v371
        %393 = vmatpush.msra.mxu0 %v370
        %394 = vmatpush.msra.mxu0 %v369
        %395 = vmatpush.msra.mxu0 %v368
        %396 = vmatmul.f32.gmra.mxu0 %v378
        %v397 = vpop.f32.mrf.mxu0
        %v398 = vadd.f32 %v374, %v397
        %399 = vdwg.mxu0
        %v400 = vmul.f32 %v398, 0.70710677
        %vm401 = vcmask 58368
        %402 = vst.msk [vmem:[#allocation2] sm:$0x3] %vm401, %v400
        %404 = vrot.lane.b32.xlu0 %v398, 96
        %v405 = vpop.permute.xlu0 %404
        %407 = vst.msk [vmem:[#allocation3] sm:$0x3] %vm401, %v405
        %408 = vrot.lane.b32.xlu0 %v398, 64
        %v409 = vpop.permute.xlu0 %408
        %411 = vst.msk [vmem:[#allocation4] sm:$0x3] %vm401, %v409
        %413 = vrot.lane.b32.xlu0 %v400, 120
        %v414 = vpop.permute.xlu0 %413
        %416 = vst.msk [vmem:[#allocation2 + $0x2] sm:$0x3] %vm401, %v414
        %417 = vrot.lane.b32.xlu0 %v398, 88
        %v418 = vpop.permute.xlu0 %417
        %420 = vst.msk [vmem:[#allocation3 + $0x2] sm:$0x3] %vm401, %v418
        %421 = vrot.lane.b32.xlu0 %v398, 56
        %v422 = vpop.permute.xlu0 %421
        %424 = vst.msk [vmem:[#allocation4 + $0x2] sm:$0x3] %vm401, %v422
        %425 = vrot.lane.b32.xlu0 %v400, 112
        %v426 = vpop.permute.xlu0 %425
        %428 = vst.msk [vmem:[#allocation2 + $0x4] sm:$0x3] %vm401, %v426
        %429 = vrot.lane.b32.xlu0 %v398, 80
        %v430 = vpop.permute.xlu0 %429
        %432 = vst.msk [vmem:[#allocation3 + $0x4] sm:$0x3] %vm401, %v430
        %433 = vrot.lane.b32.xlu0 %v398, 48
        %v434 = vpop.permute.xlu0 %433
        %436 = vst.msk [vmem:[#allocation4 + $0x4] sm:$0x3] %vm401, %v434
        %437 = vrot.lane.b32.xlu0 %v400, 104
        %v438 = vpop.permute.xlu0 %437
        %440 = vst.msk [vmem:[#allocation2 + $0x6] sm:$0x3] %vm401, %v438
        %441 = vrot.lane.b32.xlu0 %v398, 72
        %v442 = vpop.permute.xlu0 %441
        %444 = vst.msk [vmem:[#allocation3 + $0x6] sm:$0x3] %vm401, %v442
        %445 = vrot.lane.b32.xlu0 %v398, 40
        %v446 = vpop.permute.xlu0 %445
        %448 = vst.msk [vmem:[#allocation4 + $0x6] sm:$0x3] %vm401, %v446
        %s449 = scalar_lea.vmem [#allocation2], 8
        %vm450 = vcmask 60418
        %451 = vst.msk [vmem:[%s449 - $0x2] sm:$0xc] %vm450, %v400
        %s452 = scalar_lea.vmem [#allocation3], 8
        %453 = vst.msk [vmem:[%s452 - $0x2] sm:$0xc] %vm450, %v405
        %s454 = scalar_lea.vmem [#allocation4], 8
        %455 = vst.msk [vmem:[%s454 - $0x2] sm:$0xc] %vm450, %v409
        %456 = vst.msk [vmem:[%s449] sm:$0xc] %vm450, %v414
        %457 = vst.msk [vmem:[%s452] sm:$0xc] %vm450, %v418
        %458 = vst.msk [vmem:[%s454] sm:$0xc] %vm450, %v422
        %459 = vst.msk [vmem:[%s449 + $0x2] sm:$0xc] %vm450, %v426
        %460 = vst.msk [vmem:[%s452 + $0x2] sm:$0xc] %vm450, %v430
        %461 = vst.msk [vmem:[%s454 + $0x2] sm:$0xc] %vm450, %v434
        %462 = vst.msk [vmem:[%s449 + $0x4] sm:$0xc] %vm450, %v438
        %463 = vst.msk [vmem:[%s452 + $0x4] sm:$0xc] %vm450, %v442
        %464 = vst.msk [vmem:[%s454 + $0x4] sm:$0xc] %vm450, %v446
        %s465 = scalar_lea.vmem [#allocation2], 16
        %vm466 = vcmask 62468
        %467 = vst.msk [vmem:[%s465 - $0x4] sm:$0x30] %vm466, %v400
        %s468 = scalar_lea.vmem [#allocation3], 16
        %469 = vst.msk [vmem:[%s468 - $0x4] sm:$0x30] %vm466, %v405
        %s470 = scalar_lea.vmem [#allocation4], 16
        %471 = vst.msk [vmem:[%s470 - $0x4] sm:$0x30] %vm466, %v409
        %472 = vst.msk [vmem:[%s465 - $0x2] sm:$0x30] %vm466, %v414
        %473 = vst.msk [vmem:[%s468 - $0x2] sm:$0x30] %vm466, %v418
        %474 = vst.msk [vmem:[%s470 - $0x2] sm:$0x30] %vm466, %v422
        %475 = vst.msk [vmem:[%s465] sm:$0x30] %vm466, %v426
        %476 = vst.msk [vmem:[%s468] sm:$0x30] %vm466, %v430
        %477 = vst.msk [vmem:[%s470] sm:$0x30] %vm466, %v434
        %478 = vst.msk [vmem:[%s465 + $0x2] sm:$0x30] %vm466, %v438
        %479 = vst.msk [vmem:[%s468 + $0x2] sm:$0x30] %vm466, %v442
        %480 = vst.msk [vmem:[%s470 + $0x2] sm:$0x30] %vm466, %v446
        %s481 = scalar_lea.vmem [#allocation2], 24
        %vm482 = vcmask 64518
        %483 = vst.msk [vmem:[%s481 - $0x6] sm:$0xc0] %vm482, %v400
        %s484 = scalar_lea.vmem [#allocation3], 24
        %485 = vst.msk [vmem:[%s484 - $0x6] sm:$0xc0] %vm482, %v405
        %s486 = scalar_lea.vmem [#allocation4], 24
        %487 = vst.msk [vmem:[%s486 - $0x6] sm:$0xc0] %vm482, %v409
        %488 = vst.msk [vmem:[%s481 - $0x4] sm:$0xc0] %vm482, %v414
        %489 = vst.msk [vmem:[%s484 - $0x4] sm:$0xc0] %vm482, %v418
        %490 = vst.msk [vmem:[%s486 - $0x4] sm:$0xc0] %vm482, %v422
        %491 = vst.msk [vmem:[%s481 - $0x2] sm:$0xc0] %vm482, %v426
        %492 = vst.msk [vmem:[%s484 - $0x2] sm:$0xc0] %vm482, %v430
        %493 = vst.msk [vmem:[%s486 - $0x2] sm:$0xc0] %vm482, %v434
        %494 = vst.msk [vmem:[%s481] sm:$0xc0] %vm482, %v438
        %495 = vst.msk [vmem:[%s484] sm:$0xc0] %vm482, %v442
        %496 = vst.msk [vmem:[%s486] sm:$0xc0] %vm482, %v446
        %v497 = vld [vmem:[#allocation2] sm:$0xff]
        %v498 = vld [vmem:[#allocation2 + $0x8] sm:$0xff]
        %v499 = vld [vmem:[#allocation2 + $0x10] sm:$0xff]
        %v500 = vld [vmem:[#allocation2 + $0x18] sm:$0xff]
        %v501 = vld [vmem:[#allocation3] sm:$0xff]
        %v502 = vld [vmem:[#allocation3 + $0x8] sm:$0xff]
        %v503 = vld [vmem:[#allocation3 + $0x10] sm:$0xff]
        %v504 = vld [vmem:[#allocation3 + $0x18] sm:$0xff]
        %v505 = vld [vmem:[#allocation4] sm:$0xff]
        %v506 = vld [vmem:[#allocation4 + $0x8] sm:$0xff]
        %v507 = vld [vmem:[#allocation4 + $0x10] sm:$0xff]
        %v508 = vld [vmem:[#allocation4 + $0x18] sm:$0xff]
        %vm509 = vcmask 64512
        %v511 = vsel %vm509, %v497, 0
        %v514 = vsel %vm509, %v501, 0
        %516 = vmatpush.xpose.msra.mxu0 0.0
        %517 = vmatpush.xpose.msra.mxu0 0.0
        %518 = vmatpush.xpose.msra.mxu0 0.0
        %519 = vmatpush.xpose.msra.mxu0 0.0
        %520 = vmatpush.xpose.msra.mxu0 0.0
        %521 = vmatpush.xpose.msra.mxu0 0.0
        %522 = vmatpush.xpose.msra.mxu0 0.0
        %523 = vmatpush.xpose.msra.mxu0 0.0
        %524 = vmatpush.xpose.msra.mxu0 0.0
        %525 = vmatpush.xpose.msra.mxu0 0.0
        %526 = vmatpush.xpose.msra.mxu0 0.0
        %527 = vmatpush.xpose.msra.mxu0 0.0
        %528 = vmatpush.xpose.msra.mxu0 0.0
        %529 = vmatpush.xpose.msra.mxu0 0.0
        %530 = vmatpush.xpose.msra.mxu0 0.0
        %531 = vmatpush.xpose.msra.mxu0 %v514
        %532 = vmatmul.f32.gmra.mxu0 %v511
        %v533 = vpop.f32.mrf.mxu0
        %v534 = vadd.f32 0.0, %v533
        %535 = vdwg.mxu0
        %v537 = vsel %vm509, %v498, 0
        %v540 = vsel %vm509, %v502, 0
        %542 = vmatpush.xpose.msra.mxu0 0.0
        %543 = vmatpush.xpose.msra.mxu0 0.0
        %544 = vmatpush.xpose.msra.mxu0 0.0
        %545 = vmatpush.xpose.msra.mxu0 0.0
        %546 = vmatpush.xpose.msra.mxu0 0.0
        %547 = vmatpush.xpose.msra.mxu0 0.0
        %548 = vmatpush.xpose.msra.mxu0 0.0
        %549 = vmatpush.xpose.msra.mxu0 0.0
        %550 = vmatpush.xpose.msra.mxu0 0.0
        %551 = vmatpush.xpose.msra.mxu0 0.0
        %552 = vmatpush.xpose.msra.mxu0 0.0
        %553 = vmatpush.xpose.msra.mxu0 0.0
        %554 = vmatpush.xpose.msra.mxu0 0.0
        %555 = vmatpush.xpose.msra.mxu0 0.0
        %556 = vmatpush.xpose.msra.mxu0 0.0
        %557 = vmatpush.xpose.msra.mxu0 %v540
        %558 = vmatmul.f32.gmra.mxu0 %v537
        %v559 = vpop.f32.mrf.mxu0
        %v560 = vadd.f32 0.0, %v559
        %561 = vdwg.mxu0
        %v563 = vsel %vm509, %v499, 0
        %v566 = vsel %vm509, %v503, 0
        %568 = vmatpush.xpose.msra.mxu0 0.0
        %569 = vmatpush.xpose.msra.mxu0 0.0
        %570 = vmatpush.xpose.msra.mxu0 0.0
        %571 = vmatpush.xpose.msra.mxu0 0.0
        %572 = vmatpush.xpose.msra.mxu0 0.0
        %573 = vmatpush.xpose.msra.mxu0 0.0
        %574 = vmatpush.xpose.msra.mxu0 0.0
        %575 = vmatpush.xpose.msra.mxu0 0.0
        %576 = vmatpush.xpose.msra.mxu0 0.0
        %577 = vmatpush.xpose.msra.mxu0 0.0
        %578 = vmatpush.xpose.msra.mxu0 0.0
        %579 = vmatpush.xpose.msra.mxu0 0.0
        %580 = vmatpush.xpose.msra.mxu0 0.0
        %581 = vmatpush.xpose.msra.mxu0 0.0
        %582 = vmatpush.xpose.msra.mxu0 0.0
        %583 = vmatpush.xpose.msra.mxu0 %v566
        %584 = vmatmul.f32.gmra.mxu0 %v563
        %v585 = vpop.f32.mrf.mxu0
        %v586 = vadd.f32 0.0, %v585
        %587 = vdwg.mxu0
        %v589 = vsel %vm509, %v500, 0
        %v592 = vsel %vm509, %v504, 0
        %594 = vmatpush.xpose.msra.mxu0 0.0
        %595 = vmatpush.xpose.msra.mxu0 0.0
        %596 = vmatpush.xpose.msra.mxu0 0.0
        %597 = vmatpush.xpose.msra.mxu0 0.0
        %598 = vmatpush.xpose.msra.mxu0 0.0
        %599 = vmatpush.xpose.msra.mxu0 0.0
        %600 = vmatpush.xpose.msra.mxu0 0.0
        %601 = vmatpush.xpose.msra.mxu0 0.0
        %602 = vmatpush.xpose.msra.mxu0 0.0
        %603 = vmatpush.xpose.msra.mxu0 0.0
        %604 = vmatpush.xpose.msra.mxu0 0.0
        %605 = vmatpush.xpose.msra.mxu0 0.0
        %606 = vmatpush.xpose.msra.mxu0 0.0
        %607 = vmatpush.xpose.msra.mxu0 0.0
        %608 = vmatpush.xpose.msra.mxu0 0.0
        %609 = vmatpush.xpose.msra.mxu0 %v592
        %610 = vmatmul.f32.gmra.mxu0 %v589
        %v611 = vpop.f32.mrf.mxu0
        %v612 = vadd.f32 0.0, %v611
        %613 = vdwg.mxu0
        %v614 = vsel %vm509, %v534, -inf
        %615 = vmax.xlane.f32.xlu0 %v614
        %v616 = vpop.xlane.xlu0 %615
        %v617 = vsel %vm509, %v560, -inf
        %618 = vmax.xlane.f32.xlu0 %v617
        %v619 = vpop.xlane.xlu0 %618
        %v620 = vsel %vm509, %v586, -inf
        %621 = vmax.xlane.f32.xlu0 %v620
        %v622 = vpop.xlane.xlu0 %621
        %v623 = vsel %vm509, %v612, -inf
        %624 = vmax.xlane.f32.xlu0 %v623
        %v625 = vpop.xlane.xlu0 %624
        %v626 = vsub.f32 %v534, %v616
        %v627 = vsub.f32 %v560, %v619
        %v628 = vsub.f32 %v586, %v622
        %v629 = vsub.f32 %v612, %v625
        %v630 = vmul.f32 %v626, 1.442695
        %v631 = vpow.pop %v630
        %v632 = vmul.f32 %v627, 1.442695
        %v633 = vpow.pop %v632
        %v634 = vmul.f32 %v628, 1.442695
        %v635 = vpow.pop %v634
        %v636 = vmul.f32 %v629, 1.442695
        %v637 = vpow.pop %v636
        %v638 = vsel %vm509, %v631, 0.0
        %639 = vadd.xlane.f32.xlu0 %v638
        %v640 = vpop.xlane.xlu0 %639
        %v641 = vsel %vm509, %v633, 0.0
        %642 = vadd.xlane.f32.xlu0 %v641
        %v643 = vpop.xlane.xlu0 %642
        %v644 = vsel %vm509, %v635, 0.0
        %645 = vadd.xlane.f32.xlu0 %v644
        %v646 = vpop.xlane.xlu0 %645
        %v647 = vsel %vm509, %v637, 0.0
        %648 = vadd.xlane.f32.xlu0 %v647
        %v649 = vpop.xlane.xlu0 %648
        %v650 = vrcp.pop %v640
        %v651 = vmul.f32 %v640, %v650
        %v652 = vsub.f32 1.0, %v651
        %v653 = vmul.f32 %v650, %v652
        %v654 = vadd.f32 %v650, %v653
        %vm655 = vweird.f32 %v640
        %vm656 = vweird.f32 %v650
        %vm657 = vmor %vm655, %vm656
        %v658 = vsel %vm657, %v650, %v654
        %v659 = vand.u32 2147483647, %v640
        %vm660 = vcmp.eq.f32.partialorder %v659, 8.507059e+37
        %v661 = vand.u32 %v640, 2147483648
        %v662 = vor.u32 1.1754944e-38, %v661
        %v663 = vsel %vm660, %v662, %v658
        %v664 = vrcp.pop %v643
        %v665 = vmul.f32 %v643, %v664
        %v666 = vsub.f32 1.0, %v665
        %v667 = vmul.f32 %v664, %v666
        %v668 = vadd.f32 %v664, %v667
        %vm669 = vweird.f32 %v643
        %vm670 = vweird.f32 %v664
        %vm671 = vmor %vm669, %vm670
        %v672 = vsel %vm671, %v664, %v668
        %v673 = vand.u32 2147483647, %v643
        %vm674 = vcmp.eq.f32.partialorder %v673, 8.507059e+37
        %v675 = vand.u32 %v643, 2147483648
        %v676 = vor.u32 1.1754944e-38, %v675
        %v677 = vsel %vm674, %v676, %v672
        %v678 = vrcp.pop %v646
        %v679 = vmul.f32 %v646, %v678
        %v680 = vsub.f32 1.0, %v679
        %v681 = vmul.f32 %v678, %v680
        %v682 = vadd.f32 %v678, %v681
        %vm683 = vweird.f32 %v646
        %vm684 = vweird.f32 %v678
        %vm685 = vmor %vm683, %vm684
        %v686 = vsel %vm685, %v678, %v682
        %v687 = vand.u32 2147483647, %v646
        %vm688 = vcmp.eq.f32.partialorder %v687, 8.507059e+37
        %v689 = vand.u32 %v646, 2147483648
        %v690 = vor.u32 1.1754944e-38, %v689
        %v691 = vsel %vm688, %v690, %v686
        %v692 = vrcp.pop %v649
        %v693 = vmul.f32 %v649, %v692
        %v694 = vsub.f32 1.0, %v693
        %v695 = vmul.f32 %v692, %v694
        %v696 = vadd.f32 %v692, %v695
        %vm697 = vweird.f32 %v649
        %vm698 = vweird.f32 %v692
        %vm699 = vmor %vm697, %vm698
        %v700 = vsel %vm699, %v692, %v696
        %v701 = vand.u32 2147483647, %v649
        %vm702 = vcmp.eq.f32.partialorder %v701, 8.507059e+37
        %v703 = vand.u32 %v649, 2147483648
        %v704 = vor.u32 1.1754944e-38, %v703
        %v705 = vsel %vm702, %v704, %v700
        %v706 = vmul.f32 %v631, %v663
        %v707 = vmul.f32 %v633, %v677
        %v708 = vmul.f32 %v635, %v691
        %v709 = vmul.f32 %v637, %v705
        %710 = vst.msk [vmem:[%s366] sm:$0xff] %vm509, %v706
        %711 = vst.msk [vmem:[%s366 + $0x8] sm:$0xff] %vm509, %v707
        %712 = vst.msk [vmem:[%s366 + $0x10] sm:$0xff] %vm509, %v708
        %713 = vst.msk [vmem:[%s366 + $0x18] sm:$0xff] %vm509, %v709
        %v715 = vsel %vm509, %v706, 0
        %717 = vmatpush.msra.mxu0 0.0
        %718 = vmatpush.msra.mxu0 0.0
        %719 = vmatpush.msra.mxu0 0.0
        %720 = vmatpush.msra.mxu0 0.0
        %721 = vmatpush.msra.mxu0 0.0
        %722 = vmatpush.msra.mxu0 0.0
        %723 = vmatpush.msra.mxu0 0.0
        %724 = vmatpush.msra.mxu0 0.0
        %725 = vmatpush.msra.mxu0 0.0
        %726 = vmatpush.msra.mxu0 0.0
        %727 = vmatpush.msra.mxu0 0.0
        %728 = vmatpush.msra.mxu0 0.0
        %729 = vmatpush.msra.mxu0 0.0
        %730 = vmatpush.msra.mxu0 0.0
        %731 = vmatpush.msra.mxu0 0.0
        %732 = vmatpush.msra.mxu0 %v505
        %733 = vmatmul.f32.gmra.mxu0 %v715
        %v734 = vpop.f32.mrf.mxu0
        %v735 = vadd.f32 0.0, %v734
        %736 = vdwg.mxu0
        %v738 = vsel %vm509, %v707, 0
        %740 = vmatpush.msra.mxu0 0.0
        %741 = vmatpush.msra.mxu0 0.0
        %742 = vmatpush.msra.mxu0 0.0
        %743 = vmatpush.msra.mxu0 0.0
        %744 = vmatpush.msra.mxu0 0.0
        %745 = vmatpush.msra.mxu0 0.0
        %746 = vmatpush.msra.mxu0 0.0
        %747 = vmatpush.msra.mxu0 0.0
        %748 = vmatpush.msra.mxu0 0.0
        %749 = vmatpush.msra.mxu0 0.0
        %750 = vmatpush.msra.mxu0 0.0
        %751 = vmatpush.msra.mxu0 0.0
        %752 = vmatpush.msra.mxu0 0.0
        %753 = vmatpush.msra.mxu0 0.0
        %754 = vmatpush.msra.mxu0 0.0
        %755 = vmatpush.msra.mxu0 %v506
        %756 = vmatmul.f32.gmra.mxu0 %v738
        %v757 = vpop.f32.mrf.mxu0
        %v758 = vadd.f32 0.0, %v757
        %759 = vdwg.mxu0
        %v761 = vsel %vm509, %v708, 0
        %763 = vmatpush.msra.mxu0 0.0
        %764 = vmatpush.msra.mxu0 0.0
        %765 = vmatpush.msra.mxu0 0.0
        %766 = vmatpush.msra.mxu0 0.0
        %767 = vmatpush.msra.mxu0 0.0
        %768 = vmatpush.msra.mxu0 0.0
        %769 = vmatpush.msra.mxu0 0.0
        %770 = vmatpush.msra.mxu0 0.0
        %771 = vmatpush.msra.mxu0 0.0
        %772 = vmatpush.msra.mxu0 0.0
        %773 = vmatpush.msra.mxu0 0.0
        %774 = vmatpush.msra.mxu0 0.0
        %775 = vmatpush.msra.mxu0 0.0
        %776 = vmatpush.msra.mxu0 0.0
        %777 = vmatpush.msra.mxu0 0.0
        %778 = vmatpush.msra.mxu0 %v507
        %779 = vmatmul.f32.gmra.mxu0 %v761
        %v780 = vpop.f32.mrf.mxu0
        %v781 = vadd.f32 0.0, %v780
        %782 = vdwg.mxu0
        %v784 = vsel %vm509, %v709, 0
        %786 = vmatpush.msra.mxu0 0.0
        %787 = vmatpush.msra.mxu0 0.0
        %788 = vmatpush.msra.mxu0 0.0
        %789 = vmatpush.msra.mxu0 0.0
        %790 = vmatpush.msra.mxu0 0.0
        %791 = vmatpush.msra.mxu0 0.0
        %792 = vmatpush.msra.mxu0 0.0
        %793 = vmatpush.msra.mxu0 0.0
        %794 = vmatpush.msra.mxu0 0.0
        %795 = vmatpush.msra.mxu0 0.0
        %796 = vmatpush.msra.mxu0 0.0
        %797 = vmatpush.msra.mxu0 0.0
        %798 = vmatpush.msra.mxu0 0.0
        %799 = vmatpush.msra.mxu0 0.0
        %800 = vmatpush.msra.mxu0 0.0
        %801 = vmatpush.msra.mxu0 %v508
        %802 = vmatmul.f32.gmra.mxu0 %v784
        %v803 = vpop.f32.mrf.mxu0
        %v804 = vadd.f32 0.0, %v803
        %805 = vdwg.mxu0
        %806 = vst.msk [vmem:[#allocation5] sm:$0x3] %vm401, %v735
        %808 = vrot.lane.b32.xlu0 %v735, 8
        %v809 = vpop.permute.xlu0 %808
        %vm811 = vcmask 126018
        %812 = vst.msk [vmem:[#allocation5 - $0x2] sm:$0xc] %vm811, %v809
        %813 = vrot.lane.b32.xlu0 %v735, 16
        %v814 = vpop.permute.xlu0 %813
        %vm816 = vcmask 193668
        %817 = vst.msk [vmem:[#allocation5 - $0x4] sm:$0x30] %vm816, %v814
        %818 = vrot.lane.b32.xlu0 %v735, 24
        %v819 = vpop.permute.xlu0 %818
        %vm821 = vcmask 261318
        %822 = vst.msk [vmem:[#allocation5 - $0x6] sm:$0xc0] %vm821, %v819
        %823 = vst.msk [vmem:[#allocation5 + $0x2] sm:$0x3] %vm401, %v758
        %825 = vrot.lane.b32.xlu0 %v758, 8
        %v826 = vpop.permute.xlu0 %825
        %828 = vst.msk [vmem:[#allocation5] sm:$0xc] %vm811, %v826
        %829 = vrot.lane.b32.xlu0 %v758, 16
        %v830 = vpop.permute.xlu0 %829
        %832 = vst.msk [vmem:[#allocation5 - $0x2] sm:$0x30] %vm816, %v830
        %833 = vrot.lane.b32.xlu0 %v758, 24
        %v834 = vpop.permute.xlu0 %833
        %836 = vst.msk [vmem:[#allocation5 - $0x4] sm:$0xc0] %vm821, %v834
        %837 = vst.msk [vmem:[#allocation5 + $0x4] sm:$0x3] %vm401, %v781
        %839 = vrot.lane.b32.xlu0 %v781, 8
        %v840 = vpop.permute.xlu0 %839
        %842 = vst.msk [vmem:[#allocation5 + $0x2] sm:$0xc] %vm811, %v840
        %843 = vrot.lane.b32.xlu0 %v781, 16
        %v844 = vpop.permute.xlu0 %843
        %846 = vst.msk [vmem:[#allocation5] sm:$0x30] %vm816, %v844
        %847 = vrot.lane.b32.xlu0 %v781, 24
        %v848 = vpop.permute.xlu0 %847
        %850 = vst.msk [vmem:[#allocation5 - $0x2] sm:$0xc0] %vm821, %v848
        %851 = vst.msk [vmem:[#allocation5 + $0x6] sm:$0x3] %vm401, %v804
        %853 = vrot.lane.b32.xlu0 %v804, 8
        %v854 = vpop.permute.xlu0 %853
        %856 = vst.msk [vmem:[#allocation5 + $0x4] sm:$0xc] %vm811, %v854
        %857 = vrot.lane.b32.xlu0 %v804, 16
        %v858 = vpop.permute.xlu0 %857
        %860 = vst.msk [vmem:[#allocation5 + $0x2] sm:$0x30] %vm816, %v858
        %861 = vrot.lane.b32.xlu0 %v804, 24
        %v862 = vpop.permute.xlu0 %861
        %864 = vst.msk [vmem:[#allocation5] sm:$0xc0] %vm821, %v862
        %v865 = vld [vmem:[#allocation5] sm:$0xff]
        %v866 = vld [vmem:[#allocation11] sm:$0xff]
        %v867 = vld [vmem:[#allocation11 + $0x8] sm:$0xff]
        %v868 = vld [vmem:[#allocation11 + $0x10] sm:$0xff]
        %v869 = vld [vmem:[#allocation11 + $0x18] sm:$0xff]
        %v870 = vld [vmem:[%s4] sm:$0x1]
        %v872 = vperm.slane %v870, 0
        %v875 = vsel %vm376, %v865, 0
        %877 = vmatpush.msra.mxu0 0.0
        %878 = vmatpush.msra.mxu0 0.0
        %879 = vmatpush.msra.mxu0 0.0
        %880 = vmatpush.msra.mxu0 0.0
        %881 = vmatpush.msra.mxu0 0.0
        %882 = vmatpush.msra.mxu0 0.0
        %883 = vmatpush.msra.mxu0 0.0
        %884 = vmatpush.msra.mxu0 0.0
        %885 = vmatpush.msra.mxu0 0.0
        %886 = vmatpush.msra.mxu0 0.0
        %887 = vmatpush.msra.mxu0 0.0
        %888 = vmatpush.msra.mxu0 0.0
        %889 = vmatpush.msra.mxu0 %v869
        %890 = vmatpush.msra.mxu0 %v868
        %891 = vmatpush.msra.mxu0 %v867
        %892 = vmatpush.msra.mxu0 %v866
        %893 = vmatmul.f32.gmra.mxu0 %v875
        %v894 = vpop.f32.mrf.mxu0
        %v895 = vadd.f32 %v872, %v894
        %896 = vdwg.mxu0
        %v897 = vadd.f32 %v367, %v895
        %v898 = vsel %vm376, %v897, 0.0
        %899 = vadd.xlane.f32.xlu0 %v898
        %v900 = vpop.xlane.xlu0 %899
        %v901 = vrcp.pop 32.0
        %v902 = vmul.f32 32.0, %v901
        %v903 = vsub.f32 1.0, %v902
        %v904 = vmul.f32 %v901, %v903
        %v905 = vadd.f32 %v901, %v904
        %vm906 = vweird.f32 %v901
        %v907 = vsel %vm906, %v901, %v905
        %v908 = vmul.f32 %v900, %v907
        %v909 = vsub.f32 %v897, %v908
        %v910 = vmul.f32 %v909, %v909
        %v911 = vsel %vm376, %v910, 0.0
        %912 = vadd.xlane.f32.xlu0 %v911
        %v913 = vpop.xlane.xlu0 %912
        %v914 = vmul.f32 %v913, %v907
        %v915 = vadd.f32 %v914, 1e-05
        %v916 = vrsqrt.pop %v915
        %v917 = vmul.f32 %v916, %v915
        %v918 = vmul.f32 %v917, %v916
        %v919 = vmul.f32 0.5, %v918
        %v920 = vsub.f32 1.5, %v919
        %v921 = vmul.f32 %v916, %v920
        %vm922 = vweird.f32 %v915
        %vm923 = vweird.f32 %v916
        %vm924 = vmor %vm922, %vm923
        %v925 = vsel %vm924, %v916, %v921
        %v926 = vmul.f32 %v909, %v925
        %v927 = vld [vmem:[%s5] sm:$0x1]
        %v929 = vperm.slane %v927, 0
        %v931 = vmul.f32 %v926, %v929
        %v932 = vld [vmem:[%s6] sm:$0x1]
        %v934 = vperm.slane %v932, 0
        %v936 = vadd.f32 %v931, %v934
        %937 = vst.msk [vmem:[%s359] sm:$0xff] %vm376, %v936
        %s938 = sand.u32 %s190, 1
        %s939 = scalar_lea.sflag [#allocation8], %s938
        %s940 = sand.u32 %s190, 1
        %s941 = smul.addr %s940, 8
        %s942 = scalar_lea.vmem [#allocation12], %s941
        %s943 = sand.u32 %s216, 1
        %s944 = scalar_lea.sflag [#allocation14], %s943
        %s945 = sand.u32 %s216, 1
        %s946 = smul.addr %s945, 32
        %s947 = scalar_lea.vmem [#allocation13], %s946
        // Predicated region
        $region61: #{tpu_custom_call.1} parent=47 // pred_check
          %p948 = pneg %p200
        $region62: #{tpu_custom_call.1} parent=47 // pred_check_branch
          %950 = sbr.rel (%p948) target = $region64
        $region63: #{tpu_custom_call.1} parent=47 // pred_region
          %952 = vsyncadd %s939, 0
          %s953 = smul.addr %s30, 8
          %s954 = scalar_lea.hbm %s7, %s953
          %s956 = sshll.u32 %s942, 4
          %s957 = int_to_ptr.vmem [resolvable:$true] %s956
          %s958 = sshll.u32 %s954, 4
          %s959 = int_to_ptr.hbm [resolvable:$true] %s958
          %961 = dma.vmem_to_hbm [thread:$0]  %s957, 128, %s959, %s939
        $region64: #{tpu_custom_call.1} parent=47 // pred_fallthru
          _
        // Predicated region
        $region65: #{tpu_custom_call.1} parent=47 // pred_check
          %p962 = pneg %p226
        $region66: #{tpu_custom_call.1} parent=47 // pred_check_branch
          %964 = sbr.rel (%p962) target = $region68
        $region67: #{tpu_custom_call.1} parent=47 // pred_region
          %966 = vsyncadd %s944, 0
          %s967 = smul.addr %s30, 4
          %s968 = smul.addr %s967, 8
          %s969 = scalar_lea.hbm %s8, %s968
          %s970 = sshll.u32 %s947, 4
          %s971 = int_to_ptr.vmem [resolvable:$true] %s970
          %s972 = sshll.u32 %s969, 4
          %s973 = int_to_ptr.hbm [resolvable:$true] %s972
          %978 = dma.vmem_to_hbm [thread:$0]  %s971, 512, %s973, %s944, 128, 128, 8
        $region68: #{tpu_custom_call.1} parent=47 // pred_fallthru
          _
      $region48: #{tpu_custom_call.1} parent=5 // pred_fallthru
        _
      %p979 = scmp.le.s32.totalorder 2, %s25
      // Predicated region
      $region69: #{tpu_custom_call.1} parent=5 // pred_check
        %p980 = pneg %p979
      $region70: #{tpu_custom_call.1} parent=5 // pred_check_branch
        %982 = sbr.rel (%p980) target = $region72
      $region71: #{tpu_custom_call.1} parent=5 // pred_region
        %s983 = ssub.s32 %s25, 2
        // Predicated region
        $region73: #{tpu_custom_call.1} parent=71 // pred_check
          %p984 = pneg %p206
        $region74: #{tpu_custom_call.1} parent=71 // pred_check_branch
          %986 = sbr.rel (%p984) target = $region76
        $region75: #{tpu_custom_call.1} parent=71 // pred_region
          %s987 = sand.u32 %s191, 1
          %s988 = scalar_lea.sflag [#allocation8], %s987
          %s989 = sand.u32 %s191, 1
          %s990 = smul.addr %s989, 8
          %s991 = scalar_lea.vmem [#allocation12], %s990
          %993 = dma.done %s988, 128
        $region76: #{tpu_custom_call.1} parent=71 // pred_fallthru
          _
        // Predicated region
        $region77: #{tpu_custom_call.1} parent=71 // pred_check
          %p994 = pneg %p232
        $region78: #{tpu_custom_call.1} parent=71 // pred_check_branch
          %996 = sbr.rel (%p994) target = $region80
        $region79: #{tpu_custom_call.1} parent=71 // pred_region
          %s997 = sand.u32 %s217, 1
          %s998 = scalar_lea.sflag [#allocation14], %s997
          %s999 = sand.u32 %s217, 1
          %s1000 = smul.addr %s999, 32
          %s1001 = scalar_lea.vmem [#allocation13], %s1000
          %1003 = dma.done %s998, 512
        $region80: #{tpu_custom_call.1} parent=71 // pred_fallthru
          _
      $region72: #{tpu_custom_call.1} parent=5 // pred_fallthru
        _
    $region6: #{tpu_custom_call.1} parent=1 // loop_footer
      %s29 = sadd.s32 1, %s25
    $region7: #{tpu_custom_call.1} parent=1 // loop_footer_branch
      %24 = sbr.rel target = $region3
    $region8: #{tpu_custom_call.1} parent=1 // loop_exit
      _
    %1004 = vsyncpa [#allocation7], 1
    %s1005 = scalar_lea.sflag [#allocation7], 1
    %1006 = vsyncpa %s1005, 1
    %1007 = vsyncpa [#allocation10], 1
    %1008 = vsyncpa [#allocation8], 1
    %s1009 = scalar_lea.sflag [#allocation8], 1
    %1010 = vsyncpa %s1009, 1
    %1011 = vsyncpa [#allocation14], 1
    %s1012 = scalar_lea.sflag [#allocation14], 1
    %1013 = vsyncpa %s1012, 1

</llo_original>
